<compile_context>
chip_gen: v7x
topology: tpu7x:2x2x1
jax: 0.10.0
libtpu: 0.0.40
codegen_flags: <defaults>
</compile_context>

<pallas_src>
import functools

import numpy as np
import jax
import jax.numpy as jnp
from jax import lax
from jax.experimental import pallas as pl
from jax.experimental.pallas import tpu as pltpu

SLOPE_ALPHA = 0.2   # LeakyReLU negative slope used by the reference block
_NEG_BIG = -1e30


def _round_up(v, m):
    return ((v + m - 1) // m) * m


def _gat_kernel(adj_ref, xw_ref, nl_ref, bias_ref, out_ref, *, n_pad, n_sel):
    # adj_ref:  (TB*n_pad, num_nodes) flattened adjacency; one nonzero per valid
    #           row; row 0 of each n_pad-group selects the center node.
    # xw_ref:   (num_nodes, H*F_out)  precomputed x @ W, head-tiled.
    # nl_ref:   (num_nodes, 2)        per-node [h.a_src, h.a_dst] logits.
    # bias_ref: (1, H*F_out)          head-tiled bias.
    # out_ref:  (TB, H*F_out)
    tb = out_ref.shape[0]
    hf = out_ref.shape[1]

    sel = (adj_ref[...] != 0).astype(jnp.float32)                    # (TB*n_pad, nodes)

    # Fused gathers on the MXU (exact: at most one nonzero per row).
    h = jnp.dot(sel, xw_ref[...], preferred_element_type=jnp.float32)   # (TB*n_pad, hf)
    s = jnp.dot(sel, nl_ref[...], preferred_element_type=jnp.float32)   # (TB*n_pad, 2)

    # Tile-aligned splits into per-neighborhood groups of n_pad sublanes.
    h3 = h.reshape(tb, n_pad, hf)                                    # (TB, n_pad, hf)
    s3 = s.reshape(tb, n_pad, 2)                                     # (TB, n_pad, 2)

    # z_j = h_center . a_src + h_j . a_dst, then LeakyReLU(0.2).
    z = s3[:, 0:1, 0:1] + s3[:, :, 1:2]                              # (TB, n_pad, 1)
    z = jnp.where(z > 0, z, SLOPE_ALPHA * z)

    # Softmax over neighbors only: row 0 (center) and padded rows masked.
    row = lax.broadcasted_iota(jnp.int32, z.shape, 1)
    valid = jnp.logical_and(row >= 1, row < n_sel)
    z = jnp.where(valid, z, _NEG_BIG)
    z_max = jnp.max(z, axis=1, keepdims=True)                        # (TB, 1, 1)
    e = jnp.exp(z - z_max) * valid.astype(jnp.float32)               # padded rows -> 0
    denom = jnp.maximum(jnp.sum(e, axis=1, keepdims=True), 1e-20)    # guard empty groups
    inv = pl.reciprocal(denom, approx=True)                          # EUP
    inv = inv * (2.0 - denom * inv)                                  # one Newton step
    alpha = e * inv                                                  # (TB, n_pad, 1)

    # Attention-weighted neighbor sum (VPU multiply + sublane-group reduce).
    h_prime = jnp.sum(alpha * h3, axis=1)                            # (TB, hf)
    out_ref[...] = h_prime + bias_ref[...]


def gat_conv_forward_batched(x, adj_batch, weight, a, bias, num_head):
    """x: (num_nodes, F_in); adj_batch: (B, n_sel, num_nodes), one nonzero/row.

    Returns (B, num_head*F_out); row b == torch.cat(heads, dim=1) for
    neighborhood b (eval mode).
    """
    B, n_sel, num_nodes = adj_batch.shape
    f_out = weight.shape[1]
    hf = num_head * f_out

    # Neighborhood rows padded to a sublane multiple.
    n_pad = _round_up(max(n_sel, 1), 8)

    # Tile choice: ~2 parallel grid steps for larger batches (v7x has 2 TCs and
    # only parallel grid steps shard across them); tiny batches collapse to one
    # step (the only lever on single-TC v5e/v6e).  TB is a sublane multiple.
    steps_hint = 2 if B > 8 else 1
    tb = min(max(_round_up(pl.cdiv(B, steps_hint), 8), 8), 512)
    grid_b = pl.cdiv(B, tb)
    b_pad = grid_b * tb

    # Grid-invariant precompute (hoisted out of the kernel).
    x32 = x.astype(jnp.float32)
    w32 = weight.astype(jnp.float32)
    h0 = x32 @ w32                                                   # (nodes, F_out)
    xw = jnp.tile(h0, (1, num_head))                                 # (nodes, H*F_out)
    a2 = a.reshape(2, f_out).astype(jnp.float32)                     # [a_src ; a_dst]
    nl = h0 @ a2.T                                                   # (nodes, 2)
    bias_t = jnp.tile(bias.reshape(1, f_out).astype(jnp.float32), (1, num_head))

    # Pad batch/rows with zeros (padded rows/neighborhoods are masked or sliced).
    adj_f = jnp.zeros((b_pad, n_pad, num_nodes), jnp.float32)
    adj_f = adj_f.at[:B, :n_sel, :].set(adj_batch.astype(jnp.float32))
    adj_flat = adj_f.reshape(b_pad * n_pad, num_nodes)

    kernel = functools.partial(_gat_kernel, n_pad=n_pad, n_sel=n_sel)
    out = pl.pallas_call(
        kernel,
        out_shape=jax.ShapeDtypeStruct((b_pad, hf), jnp.float32),
        grid=(grid_b,),
        in_specs=[
            pl.BlockSpec((tb * n_pad, num_nodes), lambda g: (g, 0)),
            pl.BlockSpec((num_nodes, hf), lambda g: (0, 0)),
            pl.BlockSpec((num_nodes, 2), lambda g: (0, 0)),
            pl.BlockSpec((1, hf), lambda g: (0, 0)),
        ],
        out_specs=pl.BlockSpec((tb, hf), lambda g: (g, 0)),
        compiler_params=pltpu.CompilerParams(
            dimension_semantics=("parallel",)),
    )(adj_flat, xw, nl, bias_t)
    return out[:B]


def gat_conv_forward(x, adj, weight, a, bias, num_head):
    """Single-neighborhood forward; adj: (n_sel, num_nodes). Returns (1, H*F_out)."""
    return gat_conv_forward_batched(x, adj[None], weight, a, bias, num_head)


def gat_conv_ref(x, adj, weight, a, bias, num_head):
    """Pure-JAX reference mirroring the intended PyTorch semantics (eval mode)."""
    idx = jnp.argmax(adj != 0, axis=1)
    sel = x[idx, :]
    h = sel @ weight
    heads = []
    for _ in range(num_head):
        es = []
        for j in range(1, sel.shape[0]):
            hij = jnp.concatenate([h[0], h[j]])
            zv = hij @ a[:, 0]
            zv = jnp.where(zv > 0, zv, SLOPE_ALPHA * zv)
            es.append(jnp.exp(zv))
        e = jnp.stack(es)
        alpha = e / jnp.sum(e)
        h_prime = jnp.sum(alpha[:, None] * h[1:], axis=0) + bias
        heads.append(h_prime)
    return jnp.concatenate(heads).reshape(1, -1)


if __name__ == "__main__":
    in_features = 16
    out_features = 32
    num_head = 4          # num_head * out_features == 128 -> lane-dense output
    num_nodes = 10
    n_sel = 6             # neighborhood size (center + 5 neighbors)
    batch = 64            # neighborhoods; TB=32 -> 2 parallel grid steps

    key = jax.random.PRNGKey(0)
    kx, kw, ka = jax.random.split(key, 3)

    x = jax.random.normal(kx, (num_nodes, in_features), dtype=jnp.float32)

    # adj_batch: exactly one nonzero per row; row 0 of each neighborhood = center.
    rs = np.random.RandomState(0)
    adj_np = np.zeros((batch, n_sel, num_nodes), dtype=np.float32)
    for b in range(batch):
        sel_idx = rs.choice(num_nodes, size=n_sel, replace=False)
        adj_np[b, np.arange(n_sel), sel_idx] = 1.0
    adj_batch = jnp.asarray(adj_np)

    # Deterministic xavier_uniform(gain=1.414)-style init.
    gain = 1.414
    bw = gain * np.sqrt(6.0 / (in_features + out_features))
    weight = jax.random.uniform(kw, (in_features, out_features),
                                minval=-bw, maxval=bw, dtype=jnp.float32)
    ba = gain * np.sqrt(6.0 / (2 * out_features + 1))
    a = jax.random.uniform(ka, (2 * out_features, 1),
                           minval=-ba, maxval=ba, dtype=jnp.float32)
    bias = 0.05 * jnp.arange(out_features, dtype=jnp.float32)

    # Batched kernel call.
    out_b = jax.block_until_ready(
        gat_conv_forward_batched(x, adj_batch, weight, a, bias, num_head))
    assert out_b.shape == (batch, num_head * out_features)

    # Vectorized reference check (tolerance covers approx-recip + Newton and
    # max-stabilized softmax reordering).
    ref_fn = jax.jit(jax.vmap(
        functools.partial(gat_conv_ref, num_head=num_head),
        in_axes=(None, 0, None, None, None)))
    ref_all = np.asarray(ref_fn(x, adj_batch, weight, a, bias)).reshape(batch, -1)
    np.testing.assert_allclose(np.asarray(out_b), ref_all, rtol=1e-4, atol=1e-4)

    # Single-neighborhood wrapper keeps the original (1, num_head*F_out) output.
    out_1 = jax.block_until_ready(
        gat_conv_forward(x, adj_batch[0], weight, a, bias, num_head))
    assert out_1.shape == (1, num_head * out_features)
    np.testing.assert_allclose(
        np.asarray(out_1),
        np.asarray(gat_conv_ref(x, adj_batch[0], weight, a, bias, num_head)),
        rtol=1e-4, atol=1e-4)

    print("KERNEL_OK")
</pallas_src>

<mosaic_0001>
module attributes {stable_mosaic.version = 11 : i64} {
  func.func @_gat_kernel(%arg0: i32, %arg1: memref<256x10xf32, #tpu.memory_space<vmem>>, %arg2: memref<10x128xf32, #tpu.memory_space<vmem>>, %arg3: memref<10x2xf32, #tpu.memory_space<vmem>>, %arg4: memref<1x128xf32, #tpu.memory_space<vmem>>, %arg5: memref<32x128xf32, #tpu.memory_space<vmem>>) attributes {dimension_semantics = [#tpu.dimension_semantics<parallel>], iteration_bounds = array<i64: 2>, scalar_prefetch = 0 : i64, scratch_operands = 0 : i64, tpu.core_type = #tpu.core_type<tc>, window_params = [{transform_indices = @transform_0, window_bounds = array<i64: 256, 10>}, {pipeline_mode = #tpu.pipeline_mode<synchronous>, transform_indices = @transform_1, window_bounds = array<i64: 10, 128>}, {pipeline_mode = #tpu.pipeline_mode<synchronous>, transform_indices = @transform_2, window_bounds = array<i64: 10, 2>}, {pipeline_mode = #tpu.pipeline_mode<synchronous>, transform_indices = @transform_3, window_bounds = array<i64: 1, 128>}, {transform_indices = @transform_4, window_bounds = array<i64: 32, 128>}]} {
    %c0 = arith.constant 0 : index
    %c0_0 = arith.constant 0 : index
    %0 = vector.load %arg1[%c0, %c0_0] : memref<256x10xf32, #tpu.memory_space<vmem>>, vector<256x10xf32>
    %cst = arith.constant 0.000000e+00 : f32
    %1 = vector.broadcast %cst : f32 to vector<256x10xf32>
    %2 = arith.cmpf one, %0, %1 : vector<256x10xf32>
    %3 = arith.extui %2 : vector<256x10xi1> to vector<256x10xi32>
    %4 = arith.sitofp %3 : vector<256x10xi32> to vector<256x10xf32>
    %c0_1 = arith.constant 0 : index
    %c0_2 = arith.constant 0 : index
    %5 = vector.load %arg2[%c0_1, %c0_2] : memref<10x128xf32, #tpu.memory_space<vmem>>, vector<10x128xf32>
    %cst_3 = arith.constant dense<0.000000e+00> : vector<256x128xf32>
    %6 = tpu.matmul %4, %5, %cst_3 {dimension_numbers = #tpu.dot_dimension_numbers<[1], [0], [0], [1], [0, 0, 1, 1], [], []>} : vector<256x10xf32>, vector<10x128xf32>, vector<256x128xf32> -> vector<256x128xf32>
    %c0_4 = arith.constant 0 : index
    %c0_5 = arith.constant 0 : index
    %7 = vector.load %arg3[%c0_4, %c0_5] : memref<10x2xf32, #tpu.memory_space<vmem>>, vector<10x2xf32>
    %cst_6 = arith.constant dense<0.000000e+00> : vector<256x2xf32>
    %8 = tpu.matmul %4, %7, %cst_6 {dimension_numbers = #tpu.dot_dimension_numbers<[1], [0], [0], [1], [0, 0, 1, 1], [], []>} : vector<256x10xf32>, vector<10x2xf32>, vector<256x2xf32> -> vector<256x2xf32>
    %9 = vector.shape_cast %6 : vector<256x128xf32> to vector<32x8x128xf32>
    %10 = vector.shape_cast %8 : vector<256x2xf32> to vector<32x8x2xf32>
    %11 = vector.extract_strided_slice %10 {offsets = [0, 0, 0], sizes = [32, 1, 1], strides = [1, 1, 1]} : vector<32x8x2xf32> to vector<32x1x1xf32>
    %12 = vector.extract_strided_slice %10 {offsets = [0, 0, 1], sizes = [32, 8, 1], strides = [1, 1, 1]} : vector<32x8x2xf32> to vector<32x8x1xf32>
    %13 = vector.broadcast %11 : vector<32x1x1xf32> to vector<32x8x1xf32>
    %14 = arith.addf %13, %12 : vector<32x8x1xf32>
    %cst_7 = arith.constant 0.000000e+00 : f32
    %15 = vector.broadcast %cst_7 : f32 to vector<32x8x1xf32>
    %16 = arith.cmpf ogt, %14, %15 : vector<32x8x1xf32>
    %cst_8 = arith.constant 2.000000e-01 : f32
    %17 = vector.broadcast %cst_8 : f32 to vector<32x8x1xf32>
    %18 = arith.mulf %17, %14 : vector<32x8x1xf32>
    %19 = arith.select %16, %14, %18 : vector<32x8x1xi1>, vector<32x8x1xf32>
    %20 = tpu.iota {dimensions = array<i32: 1>} : vector<32x8x1xi32>
    %c1_i32 = arith.constant 1 : i32
    %21 = vector.broadcast %c1_i32 : i32 to vector<32x8x1xi32>
    %22 = arith.cmpi sge, %20, %21 : vector<32x8x1xi32>
    %c6_i32 = arith.constant 6 : i32
    %23 = vector.broadcast %c6_i32 : i32 to vector<32x8x1xi32>
    %24 = arith.cmpi slt, %20, %23 : vector<32x8x1xi32>
    %25 = arith.andi %22, %24 : vector<32x8x1xi1>
    %cst_9 = arith.constant -1.000000e+30 : f32
    %26 = vector.broadcast %cst_9 : f32 to vector<32x8x1xf32>
    %27 = arith.select %25, %19, %26 : vector<32x8x1xi1>, vector<32x8x1xf32>
    %cst_10 = arith.constant dense<0xFF800000> : vector<32x1xf32>
    %28 = vector.multi_reduction <maximumf>, %27, %cst_10 [1] : vector<32x8x1xf32> to vector<32x1xf32>
    %29 = vector.shape_cast %28 : vector<32x1xf32> to vector<32x1x1xf32>
    %30 = vector.broadcast %29 : vector<32x1x1xf32> to vector<32x8x1xf32>
    %31 = arith.subf %27, %30 : vector<32x8x1xf32>
    %32 = math.exp %31 : vector<32x8x1xf32>
    %33 = arith.extui %25 : vector<32x8x1xi1> to vector<32x8x1xi32>
    %34 = arith.sitofp %33 : vector<32x8x1xi32> to vector<32x8x1xf32>
    %35 = arith.mulf %32, %34 : vector<32x8x1xf32>
    %cst_11 = arith.constant dense<0.000000e+00> : vector<32x1xf32>
    %36 = vector.multi_reduction <add>, %35, %cst_11 [1] : vector<32x8x1xf32> to vector<32x1xf32>
    %37 = vector.shape_cast %36 : vector<32x1xf32> to vector<32x1x1xf32>
    %cst_12 = arith.constant 9.99999968E-21 : f32
    %38 = vector.broadcast %cst_12 : f32 to vector<32x1x1xf32>
    %39 = arith.maximumf %37, %38 : vector<32x1x1xf32>
    %40 = tpu.reciprocal %39 {approx = true} : vector<32x1x1xf32> -> vector<32x1x1xf32>
    %41 = arith.mulf %39, %40 : vector<32x1x1xf32>
    %cst_13 = arith.constant 2.000000e+00 : f32
    %42 = vector.broadcast %cst_13 : f32 to vector<32x1x1xf32>
    %43 = arith.subf %42, %41 : vector<32x1x1xf32>
    %44 = arith.mulf %40, %43 : vector<32x1x1xf32>
    %45 = vector.broadcast %44 : vector<32x1x1xf32> to vector<32x8x1xf32>
    %46 = arith.mulf %35, %45 : vector<32x8x1xf32>
    %47 = vector.broadcast %46 : vector<32x8x1xf32> to vector<32x8x128xf32>
    %48 = arith.mulf %47, %9 : vector<32x8x128xf32>
    %cst_14 = arith.constant dense<0.000000e+00> : vector<32x128xf32>
    %49 = vector.multi_reduction <add>, %48, %cst_14 [1] : vector<32x8x128xf32> to vector<32x128xf32>
    %c0_15 = arith.constant 0 : index
    %c0_16 = arith.constant 0 : index
    %50 = vector.load %arg4[%c0_15, %c0_16] : memref<1x128xf32, #tpu.memory_space<vmem>>, vector<1x128xf32>
    %51 = vector.broadcast %50 : vector<1x128xf32> to vector<32x128xf32>
    %52 = arith.addf %49, %51 : vector<32x128xf32>
    %c0_17 = arith.constant 0 : index
    %c0_18 = arith.constant 0 : index
    %53 = vector.load %arg5[%c0_17, %c0_18] : memref<32x128xf32, #tpu.memory_space<vmem>>, vector<32x128xf32>
    tpu.vector_store %arg5[%c0_17, %c0_18], %52 {strides = array<i32>} : memref<32x128xf32, #tpu.memory_space<vmem>>, vector<32x128xf32>,
    return
  }
  func.func @transform_0(%arg0: i32) -> (i32, i32) {
    %c0_i32 = arith.constant 0 : i32
    %c0_i32_0 = arith.constant 0 : i32
    return %arg0, %c0_i32 : i32, i32
  }
  func.func @transform_1(%arg0: i32) -> (i32, i32) {
    %c0_i32 = arith.constant 0 : i32
    %c0_i32_0 = arith.constant 0 : i32
    %c0_i32_1 = arith.constant 0 : i32
    return %c0_i32, %c0_i32_0 : i32, i32
  }
  func.func @transform_2(%arg0: i32) -> (i32, i32) {
    %c0_i32 = arith.constant 0 : i32
    %c0_i32_0 = arith.constant 0 : i32
    %c0_i32_1 = arith.constant 0 : i32
    return %c0_i32, %c0_i32_0 : i32, i32
  }
  func.func @transform_3(%arg0: i32) -> (i32, i32) {
    %c0_i32 = arith.constant 0 : i32
    %c0_i32_0 = arith.constant 0 : i32
    %c0_i32_1 = arith.constant 0 : i32
    return %c0_i32, %c0_i32_0 : i32, i32
  }
  func.func @transform_4(%arg0: i32) -> (i32, i32) {
    %c0_i32 = arith.constant 0 : i32
    %c0_i32_0 = arith.constant 0 : i32
    return %arg0, %c0_i32 : i32, i32
  }
}

</mosaic_0001>

<llo_original>
// kernel: tpu_custom_call.1
$region0: #{tpu_custom_call.1}
  #allocation0 [shape = 'u32[]', space=smem, size = 0x4, offset = 0x4, fixed_abs, tag = 'smem constant byte address 0x4 - core index']
  #allocation1 [shape = 'u32[144,128]{1,0:T(1,128)}', space=vmem, size = 0x12000, scoped, tag = 'internal scratch']
  %s0 = inlined_call_operand.vmem [shape: f32[512,10], index: 0, kind: input, shape index: {}]
  %s1 = inlined_call_operand.vmem [shape: f32[10,128], index: 1, kind: input, shape index: {}]
  %s2 = inlined_call_operand.vmem [shape: f32[10,2], index: 2, kind: input, shape index: {}]
  %s3 = inlined_call_operand.vmem [shape: f32[1,128], index: 3, kind: input, shape index: {}]
  %s4 = inlined_call_operand.hbm [shape: f32[64,128], index: 4, kind: output, shape index: {}]
  %s5 = sld [smem:[#allocation0]]
  $region49: #{tpu_custom_call.1} parent=0
    _
  %s7 = ssub.s32 1, %s5
  %s8 = scalar_select 0, %s7, %s5
  $region1: #{tpu_custom_call.1} parent=0
    #allocation2 [shape = 'u8[32768]{0}', space=vmem, size = 0x8000, scoped, tag = 'output window, operand 0']
    #allocation3 [shape = 's32[2]{0}', space=sflag, size = 0x8, scoped, tag = 'scoped memory for tpu_custom_call.1']
    %9 = vsyncpa [#allocation3], 0
    %s10 = scalar_lea.sflag [#allocation3], 1
    %11 = vsyncpa %s10, 0
    loop: start=0, step=1, limit=4
    $region2: #{tpu_custom_call.1} parent=1 // loop_pre_header
      _
    $region3: #{tpu_custom_call.1} parent=1 // loop_header
      %s13 = sphi 0, %s17
      %p14 = scmp.ge.s32.totalorder %s13, 4
      %s23 = sphi 0, %s25
      %s26 = sphi 0, %s23
      %s27 = sphi 0, %s26
      %s43 = sphi 0, %s27
      %s47 = sphi 0, %s47
      %s49 = sphi 0, %s47
      %s50 = sphi 0, %s49
      %s64 = sphi 0, %s50
      %s68 = sphi 0, %s68
      %s70 = sphi 0, %s68
      %s71 = sphi 0, %s70
      %s85 = sphi 0, %s71
      %s89 = sphi 0, %s89
      %s91 = sphi 0, %s89
      %s92 = sphi 0, %s91
      %s106 = sphi 0, %s92
      %s112 = sphi 0, %s114
      %s115 = sphi 0, %s112
      %s116 = sphi 0, %s115
      %s132 = sphi 0, %s116
    $region4: #{tpu_custom_call.1} parent=1 // loop_header_branch
      %16 = sbr.rel (%p14) target = $region8
    $region5: #{tpu_custom_call.1} parent=1 // loop_body
      %s18 = ssub.s32 %s13, 1
      %s19 = ssub.s32 %s13, 2
      %s20 = sadd.s32 %s13, 1
      %s21 = ssub.s32 %s13, %s20
      %p22 = scmp.eq.s32.totalorder %s21, 0
      %s24 = sadd.s32 %s23, 1
      %s25 = scalar_select %p22, %s23, %s24
      %p28 = pneg %p22
      %p29 = scmp.eq.s32.totalorder %s13, 1
      %p30 = por %p28, %p29
      %p31 = scmp.ne.s32.totalorder %s23, %s26
      %p32 = scmp.eq.s32.totalorder %s13, 0
      %p33 = por %p31, %p32
      %p34 = scmp.ne.s32.totalorder %s23, %s26
      %p35 = scmp.eq.s32.totalorder %s18, 1
      %p36 = por %p34, %p35
      %p37 = scmp.ne.s32.totalorder %s26, %s27
      %p38 = scmp.eq.s32.totalorder %s18, 0
      %p39 = por %p37, %p38
      %p40 = scmp.ne.s32.totalorder %s26, %s27
      %p41 = scmp.eq.s32.totalorder %s19, 1
      %p42 = por %p40, %p41
      %p44 = scmp.ne.s32.totalorder %s27, %s43
      %p45 = scmp.eq.s32.totalorder %s19, 0
      %p46 = por %p44, %p45
      %s48 = sadd.s32 %s47, 1
      %p51 = scmp.eq.s32.totalorder %s13, 1
      %p52 = scmp.ne.s32.totalorder %s47, %s49
      %p53 = scmp.eq.s32.totalorder %s13, 0
      %p54 = por %p52, %p53
      %p55 = scmp.ne.s32.totalorder %s47, %s49
      %p56 = scmp.eq.s32.totalorder %s18, 1
      %p57 = por %p55, %p56
      %p58 = scmp.ne.s32.totalorder %s49, %s50
      %p59 = scmp.eq.s32.totalorder %s18, 0
      %p60 = por %p58, %p59
      %p61 = scmp.ne.s32.totalorder %s49, %s50
      %p62 = scmp.eq.s32.totalorder %s19, 1
      %p63 = por %p61, %p62
      %p65 = scmp.ne.s32.totalorder %s50, %s64
      %p66 = scmp.eq.s32.totalorder %s19, 0
      %p67 = por %p65, %p66
      %s69 = sadd.s32 %s68, 1
      %p72 = scmp.eq.s32.totalorder %s13, 1
      %p73 = scmp.ne.s32.totalorder %s68, %s70
      %p74 = scmp.eq.s32.totalorder %s13, 0
      %p75 = por %p73, %p74
      %p76 = scmp.ne.s32.totalorder %s68, %s70
      %p77 = scmp.eq.s32.totalorder %s18, 1
      %p78 = por %p76, %p77
      %p79 = scmp.ne.s32.totalorder %s70, %s71
      %p80 = scmp.eq.s32.totalorder %s18, 0
      %p81 = por %p79, %p80
      %p82 = scmp.ne.s32.totalorder %s70, %s71
      %p83 = scmp.eq.s32.totalorder %s19, 1
      %p84 = por %p82, %p83
      %p86 = scmp.ne.s32.totalorder %s71, %s85
      %p87 = scmp.eq.s32.totalorder %s19, 0
      %p88 = por %p86, %p87
      %s90 = sadd.s32 %s89, 1
      %p93 = scmp.eq.s32.totalorder %s13, 1
      %p94 = scmp.ne.s32.totalorder %s89, %s91
      %p95 = scmp.eq.s32.totalorder %s13, 0
      %p96 = por %p94, %p95
      %p97 = scmp.ne.s32.totalorder %s89, %s91
      %p98 = scmp.eq.s32.totalorder %s18, 1
      %p99 = por %p97, %p98
      %p100 = scmp.ne.s32.totalorder %s91, %s92
      %p101 = scmp.eq.s32.totalorder %s18, 0
      %p102 = por %p100, %p101
      %p103 = scmp.ne.s32.totalorder %s91, %s92
      %p104 = scmp.eq.s32.totalorder %s19, 1
      %p105 = por %p103, %p104
      %p107 = scmp.ne.s32.totalorder %s92, %s106
      %p108 = scmp.eq.s32.totalorder %s19, 0
      %p109 = por %p107, %p108
      %s110 = ssub.s32 %s13, %s20
      %p111 = scmp.eq.s32.totalorder %s110, 0
      %s113 = sadd.s32 %s112, 1
      %s114 = scalar_select %p111, %s112, %s113
      %p117 = pneg %p111
      %p118 = scmp.eq.s32.totalorder %s13, 1
      %p119 = por %p117, %p118
      %p120 = scmp.ne.s32.totalorder %s112, %s115
      %p121 = scmp.eq.s32.totalorder %s13, 0
      %p122 = por %p120, %p121
      %p123 = scmp.ne.s32.totalorder %s112, %s115
      %p124 = scmp.eq.s32.totalorder %s18, 1
      %p125 = por %p123, %p124
      %p126 = scmp.ne.s32.totalorder %s115, %s116
      %p127 = scmp.eq.s32.totalorder %s18, 0
      %p128 = por %p126, %p127
      %p129 = scmp.ne.s32.totalorder %s115, %s116
      %p130 = scmp.eq.s32.totalorder %s19, 1
      %p131 = por %p129, %p130
      %p133 = scmp.ne.s32.totalorder %s116, %s132
      %p134 = scmp.eq.s32.totalorder %s19, 0
      %p135 = por %p133, %p134
      %p136 = scmp.le.s32.totalorder 1, %s13
      %p137 = scmp.lt.s32.totalorder %s13, 3
      %p138 = pnand %p136, %p137
      %p139 = pneg %p138
      // Predicated region
      $region9: #{tpu_custom_call.1} parent=5 // pred_check
        _
      $region10: #{tpu_custom_call.1} parent=5 // pred_check_branch
        %141 = sbr.rel (%p138) target = $region12
      $region11: #{tpu_custom_call.1} parent=5 // pred_region
        %s142 = ssub.s32 %s13, 1
        // Predicated region
        $region13: #{tpu_custom_call.1} parent=11 // pred_check
          %p143 = pneg %p60
        $region14: #{tpu_custom_call.1} parent=11 // pred_check_branch
          %145 = sbr.rel (%p143) target = $region16
        $region15: #{tpu_custom_call.1} parent=11 // pred_region
          _
        $region16: #{tpu_custom_call.1} parent=11 // pred_fallthru
          _
        // Predicated region
        $region17: #{tpu_custom_call.1} parent=11 // pred_check
          %p146 = pneg %p81
        $region18: #{tpu_custom_call.1} parent=11 // pred_check_branch
          %148 = sbr.rel (%p146) target = $region20
        $region19: #{tpu_custom_call.1} parent=11 // pred_region
          _
        $region20: #{tpu_custom_call.1} parent=11 // pred_fallthru
          _
        // Predicated region
        $region21: #{tpu_custom_call.1} parent=11 // pred_check
          %p149 = pneg %p102
        $region22: #{tpu_custom_call.1} parent=11 // pred_check_branch
          %151 = sbr.rel (%p149) target = $region24
        $region23: #{tpu_custom_call.1} parent=11 // pred_region
          _
        $region24: #{tpu_custom_call.1} parent=11 // pred_fallthru
          _
      $region12: #{tpu_custom_call.1} parent=5 // pred_fallthru
        _
      %p152 = scmp.lt.s32.totalorder %s13, 2
      // Predicated region
      $region25: #{tpu_custom_call.1} parent=5 // pred_check
        %p153 = pneg %p152
      $region26: #{tpu_custom_call.1} parent=5 // pred_check_branch
        %155 = sbr.rel (%p153) target = $region28
      $region27: #{tpu_custom_call.1} parent=5 // pred_region
        // Predicated region
        $region29: #{tpu_custom_call.1} parent=27 // pred_check
          %p156 = pneg %p33
        $region30: #{tpu_custom_call.1} parent=27 // pred_check_branch
          %158 = sbr.rel (%p156) target = $region32
        $region31: #{tpu_custom_call.1} parent=27 // pred_region
          %s159 = smul.u32 32, %s13
          %p160 = scmp.lt.s32.totalorder %s159, 63
          %s161 = scalar_select %p160, %s159, 63
          %s162 = smul.addr %s161, 8
          %s163 = scalar_lea.vmem %s0, %s162
          %s164 = smul.u32 32, %s13
        $region32: #{tpu_custom_call.1} parent=27 // pred_fallthru
          _
      $region28: #{tpu_custom_call.1} parent=5 // pred_fallthru
        _
      %p165 = scmp.le.s32.totalorder 1, %s13
      %p166 = scmp.lt.s32.totalorder %s13, 3
      %p167 = pnand %p165, %p166
      %p168 = pneg %p167
      // Predicated region
      $region33: #{tpu_custom_call.1} parent=5 // pred_check
        _
      $region34: #{tpu_custom_call.1} parent=5 // pred_check_branch
        %170 = sbr.rel (%p167) target = $region36
      $region35: #{tpu_custom_call.1} parent=5 // pred_region
        %s171 = ssub.s32 %s13, 1
        %s172 = smul.u32 32, %s18
        %p173 = scmp.lt.s32.totalorder %s172, 63
        %s174 = scalar_select %p173, %s172, 63
        %s175 = smul.addr %s174, 8
        %s176 = scalar_lea.vmem %s0, %s175
        %p177 = pneg %p39
        %p178 = pneg %p36
        %p179 = pneg %p60
        %p180 = pneg %p57
        %p181 = pneg %p81
        %p182 = pneg %p78
        %p183 = pneg %p102
        %p184 = pneg %p99
        %p185 = pneg %p128
        %p186 = pneg %p125
        %s187 = sand.u32 %s115, 1
        %s188 = scalar_lea.sflag [#allocation3], %s187
        %s189 = sand.u32 %s115, 1
        %s190 = smul.addr %s189, 32
        %s191 = scalar_lea.vmem [#allocation2], %s190
        %s192 = smul.u32 32, %s18
        %p193 = scmp.lt.s32.totalorder %s192, 63
        %s194 = scalar_select %p193, %s192, 63
        %s195 = smul.addr %s194, 8
        %s196 = scalar_lea.vmem %s0, %s195
        %s197 = smul.u32 32, %s18
        %s198 = smul.u32 4, %s18
        %v199 = vld [vmem:[%s196] sm:$0xff]
        %v200 = vld [vmem:[%s196 + $0x8] sm:$0xff]
        %v201 = vld [vmem:[%s196 + $0x10] sm:$0xff]
        %v202 = vld [vmem:[%s196 + $0x18] sm:$0xff]
        %v203 = vld [vmem:[%s196 + $0x20] sm:$0xff]
        %v204 = vld [vmem:[%s196 + $0x28] sm:$0xff]
        %v205 = vld [vmem:[%s196 + $0x30] sm:$0xff]
        %v206 = vld [vmem:[%s196 + $0x38] sm:$0xff]
        %v207 = vld [vmem:[%s196 + $0x40] sm:$0xff]
        %v208 = vld [vmem:[%s196 + $0x48] sm:$0xff]
        %v209 = vld [vmem:[%s196 + $0x50] sm:$0xff]
        %v210 = vld [vmem:[%s196 + $0x58] sm:$0xff]
        %v211 = vld [vmem:[%s196 + $0x60] sm:$0xff]
        %v212 = vld [vmem:[%s196 + $0x68] sm:$0xff]
        %v213 = vld [vmem:[%s196 + $0x70] sm:$0xff]
        %v214 = vld [vmem:[%s196 + $0x78] sm:$0xff]
        %v215 = vld [vmem:[%s196 + $0x80] sm:$0xff]
        %v216 = vld [vmem:[%s196 + $0x88] sm:$0xff]
        %v217 = vld [vmem:[%s196 + $0x90] sm:$0xff]
        %v218 = vld [vmem:[%s196 + $0x98] sm:$0xff]
        %v219 = vld [vmem:[%s196 + $0xa0] sm:$0xff]
        %v220 = vld [vmem:[%s196 + $0xa8] sm:$0xff]
        %v221 = vld [vmem:[%s196 + $0xb0] sm:$0xff]
        %v222 = vld [vmem:[%s196 + $0xb8] sm:$0xff]
        %v223 = vld [vmem:[%s196 + $0xc0] sm:$0xff]
        %v224 = vld [vmem:[%s196 + $0xc8] sm:$0xff]
        %v225 = vld [vmem:[%s196 + $0xd0] sm:$0xff]
        %v226 = vld [vmem:[%s196 + $0xd8] sm:$0xff]
        %v227 = vld [vmem:[%s196 + $0xe0] sm:$0xff]
        %v228 = vld [vmem:[%s196 + $0xe8] sm:$0xff]
        %v229 = vld [vmem:[%s196 + $0xf0] sm:$0xff]
        %v230 = vld [vmem:[%s196 + $0xf8] sm:$0xff]
        %vm231 = vcmp.ne.f32.partialorder %v199, 0.0
        %vm232 = vcmp.ne.f32.partialorder %v200, 0.0
        %vm233 = vcmp.ne.f32.partialorder %v201, 0.0
        %vm234 = vcmp.ne.f32.partialorder %v202, 0.0
        %vm235 = vcmp.ne.f32.partialorder %v203, 0.0
        %vm236 = vcmp.ne.f32.partialorder %v204, 0.0
        %vm237 = vcmp.ne.f32.partialorder %v205, 0.0
        %vm238 = vcmp.ne.f32.partialorder %v206, 0.0
        %vm239 = vcmp.ne.f32.partialorder %v207, 0.0
        %vm240 = vcmp.ne.f32.partialorder %v208, 0.0
        %vm241 = vcmp.ne.f32.partialorder %v209, 0.0
        %vm242 = vcmp.ne.f32.partialorder %v210, 0.0
        %vm243 = vcmp.ne.f32.partialorder %v211, 0.0
        %vm244 = vcmp.ne.f32.partialorder %v212, 0.0
        %vm245 = vcmp.ne.f32.partialorder %v213, 0.0
        %vm246 = vcmp.ne.f32.partialorder %v214, 0.0
        %vm247 = vcmp.ne.f32.partialorder %v215, 0.0
        %vm248 = vcmp.ne.f32.partialorder %v216, 0.0
        %vm249 = vcmp.ne.f32.partialorder %v217, 0.0
        %vm250 = vcmp.ne.f32.partialorder %v218, 0.0
        %vm251 = vcmp.ne.f32.partialorder %v219, 0.0
        %vm252 = vcmp.ne.f32.partialorder %v220, 0.0
        %vm253 = vcmp.ne.f32.partialorder %v221, 0.0
        %vm254 = vcmp.ne.f32.partialorder %v222, 0.0
        %vm255 = vcmp.ne.f32.partialorder %v223, 0.0
        %vm256 = vcmp.ne.f32.partialorder %v224, 0.0
        %vm257 = vcmp.ne.f32.partialorder %v225, 0.0
        %vm258 = vcmp.ne.f32.partialorder %v226, 0.0
        %vm259 = vcmp.ne.f32.partialorder %v227, 0.0
        %vm260 = vcmp.ne.f32.partialorder %v228, 0.0
        %vm261 = vcmp.ne.f32.partialorder %v229, 0.0
        %vm262 = vcmp.ne.f32.partialorder %v230, 0.0
        %v263 = vsel %vm231, 1, 0
        %v264 = vsel %vm232, 1, 0
        %v265 = vsel %vm233, 1, 0
        %v266 = vsel %vm234, 1, 0
        %v267 = vsel %vm235, 1, 0
        %v268 = vsel %vm236, 1, 0
        %v269 = vsel %vm237, 1, 0
        %v270 = vsel %vm238, 1, 0
        %v271 = vsel %vm239, 1, 0
        %v272 = vsel %vm240, 1, 0
        %v273 = vsel %vm241, 1, 0
        %v274 = vsel %vm242, 1, 0
        %v275 = vsel %vm243, 1, 0
        %v276 = vsel %vm244, 1, 0
        %v277 = vsel %vm245, 1, 0
        %v278 = vsel %vm246, 1, 0
        %v279 = vsel %vm247, 1, 0
        %v280 = vsel %vm248, 1, 0
        %v281 = vsel %vm249, 1, 0
        %v282 = vsel %vm250, 1, 0
        %v283 = vsel %vm251, 1, 0
        %v284 = vsel %vm252, 1, 0
        %v285 = vsel %vm253, 1, 0
        %v286 = vsel %vm254, 1, 0
        %v287 = vsel %vm255, 1, 0
        %v288 = vsel %vm256, 1, 0
        %v289 = vsel %vm257, 1, 0
        %v290 = vsel %vm258, 1, 0
        %v291 = vsel %vm259, 1, 0
        %v292 = vsel %vm260, 1, 0
        %v293 = vsel %vm261, 1, 0
        %v294 = vsel %vm262, 1, 0
        %v295 = vcvt.s32.f32 %v263
        %v296 = vcvt.s32.f32 %v264
        %v297 = vcvt.s32.f32 %v265
        %v298 = vcvt.s32.f32 %v266
        %v299 = vcvt.s32.f32 %v267
        %v300 = vcvt.s32.f32 %v268
        %v301 = vcvt.s32.f32 %v269
        %v302 = vcvt.s32.f32 %v270
        %v303 = vcvt.s32.f32 %v271
        %v304 = vcvt.s32.f32 %v272
        %v305 = vcvt.s32.f32 %v273
        %v306 = vcvt.s32.f32 %v274
        %v307 = vcvt.s32.f32 %v275
        %v308 = vcvt.s32.f32 %v276
        %v309 = vcvt.s32.f32 %v277
        %v310 = vcvt.s32.f32 %v278
        %v311 = vcvt.s32.f32 %v279
        %v312 = vcvt.s32.f32 %v280
        %v313 = vcvt.s32.f32 %v281
        %v314 = vcvt.s32.f32 %v282
        %v315 = vcvt.s32.f32 %v283
        %v316 = vcvt.s32.f32 %v284
        %v317 = vcvt.s32.f32 %v285
        %v318 = vcvt.s32.f32 %v286
        %v319 = vcvt.s32.f32 %v287
        %v320 = vcvt.s32.f32 %v288
        %v321 = vcvt.s32.f32 %v289
        %v322 = vcvt.s32.f32 %v290
        %v323 = vcvt.s32.f32 %v291
        %v324 = vcvt.s32.f32 %v292
        %v325 = vcvt.s32.f32 %v293
        %v326 = vcvt.s32.f32 %v294
        %v327 = vld [vmem:[%s1] sm:$0xff]
        %v328 = vld [vmem:[%s1 + $0x8] sm:$0x3]
        %vm329 = vcmask 80896
        %v331 = vsel %vm329, %v295, 0
        %v334 = vsel %vm329, %v296, 0
        %v337 = vsel %vm329, %v297, 0
        %v340 = vsel %vm329, %v298, 0
        %v343 = vsel %vm329, %v299, 0
        %v346 = vsel %vm329, %v300, 0
        %v349 = vsel %vm329, %v301, 0
        %v352 = vsel %vm329, %v302, 0
        %v355 = vsel %vm329, %v303, 0
        %v358 = vsel %vm329, %v304, 0
        %v361 = vsel %vm329, %v305, 0
        %v364 = vsel %vm329, %v306, 0
        %v367 = vsel %vm329, %v307, 0
        %v370 = vsel %vm329, %v308, 0
        %v373 = vsel %vm329, %v309, 0
        %v376 = vsel %vm329, %v310, 0
        %v379 = vsel %vm329, %v311, 0
        %v382 = vsel %vm329, %v312, 0
        %v385 = vsel %vm329, %v313, 0
        %v388 = vsel %vm329, %v314, 0
        %v391 = vsel %vm329, %v315, 0
        %v394 = vsel %vm329, %v316, 0
        %v397 = vsel %vm329, %v317, 0
        %v400 = vsel %vm329, %v318, 0
        %v403 = vsel %vm329, %v319, 0
        %v406 = vsel %vm329, %v320, 0
        %v409 = vsel %vm329, %v321, 0
        %v412 = vsel %vm329, %v322, 0
        %v415 = vsel %vm329, %v323, 0
        %v418 = vsel %vm329, %v324, 0
        %v421 = vsel %vm329, %v325, 0
        %v424 = vsel %vm329, %v326, 0
        %vm426 = vcmask 1041408
        %v428 = vsel %vm426, %v328, 0
        %430 = vmatprep.subr.mxu0 0.0
        %431 = vmatpush1.msra.mxu0 %v327
        %432 = vmatprep.subr.mxu0 0.0
        %433 = vmatpush1.msra.mxu0 %v428
        %434 = vmatprep.subr.mxu0 0.0
        %435 = vmatpush1.msra.mxu0 0.0
        %436 = vmatprep.subr.mxu0 0.0
        %437 = vmatpush1.msra.mxu0 0.0
        %438 = vmatprep.subr.mxu0 0.0
        %439 = vmatpush1.msra.mxu0 0.0
        %440 = vmatprep.subr.mxu0 0.0
        %441 = vmatpush1.msra.mxu0 0.0
        %442 = vmatprep.subr.mxu0 0.0
        %443 = vmatpush1.msra.mxu0 0.0
        %444 = vmatprep.subr.mxu0 0.0
        %445 = vmatpush1.msra.mxu0 0.0
        %446 = vmatprep.subr.mxu0 0.0
        %447 = vmatpush1.msra.mxu0 0.0
        %448 = vmatprep.subr.mxu0 0.0
        %449 = vmatpush1.msra.mxu0 0.0
        %450 = vmatprep.subr.mxu0 0.0
        %451 = vmatpush1.msra.mxu0 0.0
        %452 = vmatprep.subr.mxu0 0.0
        %453 = vmatpush1.msra.mxu0 0.0
        %454 = vmatprep.subr.mxu0 0.0
        %455 = vmatpush1.msra.mxu0 0.0
        %456 = vmatprep.subr.mxu0 0.0
        %457 = vmatpush1.msra.mxu0 0.0
        %458 = vmatprep.subr.mxu0 0.0
        %459 = vmatpush1.msra.mxu0 0.0
        %460 = vmatprep.subr.mxu0 0.0
        %461 = vmatpush1.msra.mxu0 0.0
        %462 = vmatprep.subr.mxu0 0.0
        %463 = vmatpush1.msra.mxu0 0.0
        %464 = vmatprep.subr.mxu0 0.0
        %465 = vmatpush1.msra.mxu0 0.0
        %466 = vmatprep.subr.mxu0 0.0
        %467 = vmatpush1.msra.mxu0 0.0
        %468 = vmatprep.subr.mxu0 0.0
        %469 = vmatpush1.msra.mxu0 0.0
        %470 = vmatprep.subr.mxu0 0.0
        %471 = vmatpush1.msra.mxu0 0.0
        %472 = vmatprep.subr.mxu0 0.0
        %473 = vmatpush1.msra.mxu0 0.0
        %474 = vmatprep.subr.mxu0 0.0
        %475 = vmatpush1.msra.mxu0 0.0
        %476 = vmatprep.subr.mxu0 0.0
        %477 = vmatpush1.msra.mxu0 0.0
        %478 = vmatprep.subr.mxu0 0.0
        %479 = vmatpush1.msra.mxu0 0.0
        %480 = vmatprep.subr.mxu0 0.0
        %481 = vmatpush1.msra.mxu0 0.0
        %482 = vmatprep.subr.mxu0 0.0
        %483 = vmatpush1.msra.mxu0 0.0
        %484 = vmatprep.subr.mxu0 0.0
        %485 = vmatpush1.msra.mxu0 0.0
        %486 = vmatprep.subr.mxu0 0.0
        %487 = vmatpush1.msra.mxu0 0.0
        %488 = vmatprep.subr.mxu0 0.0
        %489 = vmatpush1.msra.mxu0 0.0
        %490 = vmatprep.subr.mxu0 0.0
        %491 = vmatpush1.msra.mxu0 0.0
        %492 = vmatprep.subr.mxu0 0.0
        %493 = vmatpush1.msra.mxu0 0.0
        %494 = vmatprep.mubr.f32.mxu0 0.0
        %495 = vmatmul.mubr.f32.gmra.mrb[0].mxu0 %v331
        %v496 = vpop.f32.mrb[0].mxu0
        %v497 = vadd.f32 0.0, %v496
        %v498 = vpop.f32.mrb[0].mxu0
        %499 = vmatprep.mubr.f32.mxu0 0.0
        %500 = vmatmul.mubr.f32.gmra.mrb[0].mxu0 %v334
        %v501 = vpop.f32.mrb[0].mxu0
        %v502 = vadd.f32 0.0, %v501
        %v503 = vpop.f32.mrb[0].mxu0
        %504 = vmatprep.mubr.f32.mxu0 0.0
        %505 = vmatmul.mubr.f32.gmra.mrb[0].mxu0 %v337
        %v506 = vpop.f32.mrb[0].mxu0
        %v507 = vadd.f32 0.0, %v506
        %v508 = vpop.f32.mrb[0].mxu0
        %509 = vmatprep.mubr.f32.mxu0 0.0
        %510 = vmatmul.mubr.f32.gmra.mrb[0].mxu0 %v340
        %v511 = vpop.f32.mrb[0].mxu0
        %v512 = vadd.f32 0.0, %v511
        %v513 = vpop.f32.mrb[0].mxu0
        %514 = vmatprep.mubr.f32.mxu0 0.0
        %515 = vmatmul.mubr.f32.gmra.mrb[0].mxu0 %v343
        %v516 = vpop.f32.mrb[0].mxu0
        %v517 = vadd.f32 0.0, %v516
        %v518 = vpop.f32.mrb[0].mxu0
        %519 = vmatprep.mubr.f32.mxu0 0.0
        %520 = vmatmul.mubr.f32.gmra.mrb[0].mxu0 %v346
        %v521 = vpop.f32.mrb[0].mxu0
        %v522 = vadd.f32 0.0, %v521
        %v523 = vpop.f32.mrb[0].mxu0
        %524 = vmatprep.mubr.f32.mxu0 0.0
        %525 = vmatmul.mubr.f32.gmra.mrb[0].mxu0 %v349
        %v526 = vpop.f32.mrb[0].mxu0
        %v527 = vadd.f32 0.0, %v526
        %v528 = vpop.f32.mrb[0].mxu0
        %529 = vmatprep.mubr.f32.mxu0 0.0
        %530 = vmatmul.mubr.f32.gmra.mrb[0].mxu0 %v352
        %v531 = vpop.f32.mrb[0].mxu0
        %v532 = vadd.f32 0.0, %v531
        %v533 = vpop.f32.mrb[0].mxu0
        %534 = vmatprep.mubr.f32.mxu0 0.0
        %535 = vmatmul.mubr.f32.gmra.mrb[0].mxu0 %v355
        %v536 = vpop.f32.mrb[0].mxu0
        %v537 = vadd.f32 0.0, %v536
        %v538 = vpop.f32.mrb[0].mxu0
        %539 = vmatprep.mubr.f32.mxu0 0.0
        %540 = vmatmul.mubr.f32.gmra.mrb[0].mxu0 %v358
        %v541 = vpop.f32.mrb[0].mxu0
        %v542 = vadd.f32 0.0, %v541
        %v543 = vpop.f32.mrb[0].mxu0
        %544 = vmatprep.mubr.f32.mxu0 0.0
        %545 = vmatmul.mubr.f32.gmra.mrb[0].mxu0 %v361
        %v546 = vpop.f32.mrb[0].mxu0
        %v547 = vadd.f32 0.0, %v546
        %v548 = vpop.f32.mrb[0].mxu0
        %549 = vmatprep.mubr.f32.mxu0 0.0
        %550 = vmatmul.mubr.f32.gmra.mrb[0].mxu0 %v364
        %v551 = vpop.f32.mrb[0].mxu0
        %v552 = vadd.f32 0.0, %v551
        %v553 = vpop.f32.mrb[0].mxu0
        %554 = vmatprep.mubr.f32.mxu0 0.0
        %555 = vmatmul.mubr.f32.gmra.mrb[0].mxu0 %v367
        %v556 = vpop.f32.mrb[0].mxu0
        %v557 = vadd.f32 0.0, %v556
        %v558 = vpop.f32.mrb[0].mxu0
        %559 = vmatprep.mubr.f32.mxu0 0.0
        %560 = vmatmul.mubr.f32.gmra.mrb[0].mxu0 %v370
        %v561 = vpop.f32.mrb[0].mxu0
        %v562 = vadd.f32 0.0, %v561
        %v563 = vpop.f32.mrb[0].mxu0
        %564 = vmatprep.mubr.f32.mxu0 0.0
        %565 = vmatmul.mubr.f32.gmra.mrb[0].mxu0 %v373
        %v566 = vpop.f32.mrb[0].mxu0
        %v567 = vadd.f32 0.0, %v566
        %v568 = vpop.f32.mrb[0].mxu0
        %569 = vmatprep.mubr.f32.mxu0 0.0
        %570 = vmatmul.mubr.f32.gmra.mrb[0].mxu0 %v376
        %v571 = vpop.f32.mrb[0].mxu0
        %v572 = vadd.f32 0.0, %v571
        %v573 = vpop.f32.mrb[0].mxu0
        %574 = vmatprep.mubr.f32.mxu0 0.0
        %575 = vmatmul.mubr.f32.gmra.mrb[0].mxu0 %v379
        %v576 = vpop.f32.mrb[0].mxu0
        %v577 = vadd.f32 0.0, %v576
        %v578 = vpop.f32.mrb[0].mxu0
        %579 = vmatprep.mubr.f32.mxu0 0.0
        %580 = vmatmul.mubr.f32.gmra.mrb[0].mxu0 %v382
        %v581 = vpop.f32.mrb[0].mxu0
        %v582 = vadd.f32 0.0, %v581
        %v583 = vpop.f32.mrb[0].mxu0
        %584 = vmatprep.mubr.f32.mxu0 0.0
        %585 = vmatmul.mubr.f32.gmra.mrb[0].mxu0 %v385
        %v586 = vpop.f32.mrb[0].mxu0
        %v587 = vadd.f32 0.0, %v586
        %v588 = vpop.f32.mrb[0].mxu0
        %589 = vmatprep.mubr.f32.mxu0 0.0
        %590 = vmatmul.mubr.f32.gmra.mrb[0].mxu0 %v388
        %v591 = vpop.f32.mrb[0].mxu0
        %v592 = vadd.f32 0.0, %v591
        %v593 = vpop.f32.mrb[0].mxu0
        %594 = vmatprep.mubr.f32.mxu0 0.0
        %595 = vmatmul.mubr.f32.gmra.mrb[0].mxu0 %v391
        %v596 = vpop.f32.mrb[0].mxu0
        %v597 = vadd.f32 0.0, %v596
        %v598 = vpop.f32.mrb[0].mxu0
        %599 = vmatprep.mubr.f32.mxu0 0.0
        %600 = vmatmul.mubr.f32.gmra.mrb[0].mxu0 %v394
        %v601 = vpop.f32.mrb[0].mxu0
        %v602 = vadd.f32 0.0, %v601
        %v603 = vpop.f32.mrb[0].mxu0
        %604 = vmatprep.mubr.f32.mxu0 0.0
        %605 = vmatmul.mubr.f32.gmra.mrb[0].mxu0 %v397
        %v606 = vpop.f32.mrb[0].mxu0
        %v607 = vadd.f32 0.0, %v606
        %v608 = vpop.f32.mrb[0].mxu0
        %609 = vmatprep.mubr.f32.mxu0 0.0
        %610 = vmatmul.mubr.f32.gmra.mrb[0].mxu0 %v400
        %v611 = vpop.f32.mrb[0].mxu0
        %v612 = vadd.f32 0.0, %v611
        %v613 = vpop.f32.mrb[0].mxu0
        %614 = vmatprep.mubr.f32.mxu0 0.0
        %615 = vmatmul.mubr.f32.gmra.mrb[0].mxu0 %v403
        %v616 = vpop.f32.mrb[0].mxu0
        %v617 = vadd.f32 0.0, %v616
        %v618 = vpop.f32.mrb[0].mxu0
        %619 = vmatprep.mubr.f32.mxu0 0.0
        %620 = vmatmul.mubr.f32.gmra.mrb[0].mxu0 %v406
        %v621 = vpop.f32.mrb[0].mxu0
        %v622 = vadd.f32 0.0, %v621
        %v623 = vpop.f32.mrb[0].mxu0
        %624 = vmatprep.mubr.f32.mxu0 0.0
        %625 = vmatmul.mubr.f32.gmra.mrb[0].mxu0 %v409
        %v626 = vpop.f32.mrb[0].mxu0
        %v627 = vadd.f32 0.0, %v626
        %v628 = vpop.f32.mrb[0].mxu0
        %629 = vmatprep.mubr.f32.mxu0 0.0
        %630 = vmatmul.mubr.f32.gmra.mrb[0].mxu0 %v412
        %v631 = vpop.f32.mrb[0].mxu0
        %v632 = vadd.f32 0.0, %v631
        %v633 = vpop.f32.mrb[0].mxu0
        %634 = vmatprep.mubr.f32.mxu0 0.0
        %635 = vmatmul.mubr.f32.gmra.mrb[0].mxu0 %v415
        %v636 = vpop.f32.mrb[0].mxu0
        %v637 = vadd.f32 0.0, %v636
        %v638 = vpop.f32.mrb[0].mxu0
        %639 = vmatprep.mubr.f32.mxu0 0.0
        %640 = vmatmul.mubr.f32.gmra.mrb[0].mxu0 %v418
        %v641 = vpop.f32.mrb[0].mxu0
        %v642 = vadd.f32 0.0, %v641
        %v643 = vpop.f32.mrb[0].mxu0
        %644 = vmatprep.mubr.f32.mxu0 0.0
        %645 = vmatmul.mubr.f32.gmra.mrb[0].mxu0 %v421
        %v646 = vpop.f32.mrb[0].mxu0
        %v647 = vadd.f32 0.0, %v646
        %v648 = vpop.f32.mrb[0].mxu0
        %649 = vmatprep.mubr.f32.mxu0 0.0
        %650 = vmatmul.mubr.f32.gmra.mrb[0].mxu0 %v424
        %v651 = vpop.f32.mrb[0].mxu0
        %v652 = vadd.f32 0.0, %v651
        %v653 = vpop.f32.mrb[0].mxu0
        %654 = vdwg.mxu0
        %v655 = vld [vmem:[%s2] sm:$0xff]
        %v656 = vld [vmem:[%s2 + $0x8] sm:$0x3]
        %v658 = vsel %vm426, %v656, 0
        %660 = vmatprep.subr.mxu0 0.0
        %661 = vmatpush1.msra.mxu0 %v655
        %662 = vmatprep.subr.mxu0 0.0
        %663 = vmatpush1.msra.mxu0 %v658
        %664 = vmatprep.subr.mxu0 0.0
        %665 = vmatpush1.msra.mxu0 0.0
        %666 = vmatprep.subr.mxu0 0.0
        %667 = vmatpush1.msra.mxu0 0.0
        %668 = vmatprep.subr.mxu0 0.0
        %669 = vmatpush1.msra.mxu0 0.0
        %670 = vmatprep.subr.mxu0 0.0
        %671 = vmatpush1.msra.mxu0 0.0
        %672 = vmatprep.subr.mxu0 0.0
        %673 = vmatpush1.msra.mxu0 0.0
        %674 = vmatprep.subr.mxu0 0.0
        %675 = vmatpush1.msra.mxu0 0.0
        %676 = vmatprep.subr.mxu0 0.0
        %677 = vmatpush1.msra.mxu0 0.0
        %678 = vmatprep.subr.mxu0 0.0
        %679 = vmatpush1.msra.mxu0 0.0
        %680 = vmatprep.subr.mxu0 0.0
        %681 = vmatpush1.msra.mxu0 0.0
        %682 = vmatprep.subr.mxu0 0.0
        %683 = vmatpush1.msra.mxu0 0.0
        %684 = vmatprep.subr.mxu0 0.0
        %685 = vmatpush1.msra.mxu0 0.0
        %686 = vmatprep.subr.mxu0 0.0
        %687 = vmatpush1.msra.mxu0 0.0
        %688 = vmatprep.subr.mxu0 0.0
        %689 = vmatpush1.msra.mxu0 0.0
        %690 = vmatprep.subr.mxu0 0.0
        %691 = vmatpush1.msra.mxu0 0.0
        %692 = vmatprep.subr.mxu0 0.0
        %693 = vmatpush1.msra.mxu0 0.0
        %694 = vmatprep.subr.mxu0 0.0
        %695 = vmatpush1.msra.mxu0 0.0
        %696 = vmatprep.subr.mxu0 0.0
        %697 = vmatpush1.msra.mxu0 0.0
        %698 = vmatprep.subr.mxu0 0.0
        %699 = vmatpush1.msra.mxu0 0.0
        %700 = vmatprep.subr.mxu0 0.0
        %701 = vmatpush1.msra.mxu0 0.0
        %702 = vmatprep.subr.mxu0 0.0
        %703 = vmatpush1.msra.mxu0 0.0
        %704 = vmatprep.subr.mxu0 0.0
        %705 = vmatpush1.msra.mxu0 0.0
        %706 = vmatprep.subr.mxu0 0.0
        %707 = vmatpush1.msra.mxu0 0.0
        %708 = vmatprep.subr.mxu0 0.0
        %709 = vmatpush1.msra.mxu0 0.0
        %710 = vmatprep.subr.mxu0 0.0
        %711 = vmatpush1.msra.mxu0 0.0
        %712 = vmatprep.subr.mxu0 0.0
        %713 = vmatpush1.msra.mxu0 0.0
        %714 = vmatprep.subr.mxu0 0.0
        %715 = vmatpush1.msra.mxu0 0.0
        %716 = vmatprep.subr.mxu0 0.0
        %717 = vmatpush1.msra.mxu0 0.0
        %718 = vmatprep.subr.mxu0 0.0
        %719 = vmatpush1.msra.mxu0 0.0
        %720 = vmatprep.subr.mxu0 0.0
        %721 = vmatpush1.msra.mxu0 0.0
        %722 = vmatprep.subr.mxu0 0.0
        %723 = vmatpush1.msra.mxu0 0.0
        %724 = vmatprep.mubr.f32.mxu0 0.0
        %725 = vmatmul.mubr.f32.gmra.mrb[0].mxu0 %v331
        %v726 = vpop.f32.mrb[0].mxu0
        %v727 = vadd.f32 0.0, %v726
        %v728 = vpop.f32.mrb[0].mxu0
        %729 = vmatprep.mubr.f32.mxu0 0.0
        %730 = vmatmul.mubr.f32.gmra.mrb[0].mxu0 %v334
        %v731 = vpop.f32.mrb[0].mxu0
        %v732 = vadd.f32 0.0, %v731
        %v733 = vpop.f32.mrb[0].mxu0
        %734 = vmatprep.mubr.f32.mxu0 0.0
        %735 = vmatmul.mubr.f32.gmra.mrb[0].mxu0 %v337
        %v736 = vpop.f32.mrb[0].mxu0
        %v737 = vadd.f32 0.0, %v736
        %v738 = vpop.f32.mrb[0].mxu0
        %739 = vmatprep.mubr.f32.mxu0 0.0
        %740 = vmatmul.mubr.f32.gmra.mrb[0].mxu0 %v340
        %v741 = vpop.f32.mrb[0].mxu0
        %v742 = vadd.f32 0.0, %v741
        %v743 = vpop.f32.mrb[0].mxu0
        %744 = vmatprep.mubr.f32.mxu0 0.0
        %745 = vmatmul.mubr.f32.gmra.mrb[0].mxu0 %v343
        %v746 = vpop.f32.mrb[0].mxu0
        %v747 = vadd.f32 0.0, %v746
        %v748 = vpop.f32.mrb[0].mxu0
        %749 = vmatprep.mubr.f32.mxu0 0.0
        %750 = vmatmul.mubr.f32.gmra.mrb[0].mxu0 %v346
        %v751 = vpop.f32.mrb[0].mxu0
        %v752 = vadd.f32 0.0, %v751
        %v753 = vpop.f32.mrb[0].mxu0
        %754 = vmatprep.mubr.f32.mxu0 0.0
        %755 = vmatmul.mubr.f32.gmra.mrb[0].mxu0 %v349
        %v756 = vpop.f32.mrb[0].mxu0
        %v757 = vadd.f32 0.0, %v756
        %v758 = vpop.f32.mrb[0].mxu0
        %759 = vmatprep.mubr.f32.mxu0 0.0
        %760 = vmatmul.mubr.f32.gmra.mrb[0].mxu0 %v352
        %v761 = vpop.f32.mrb[0].mxu0
        %v762 = vadd.f32 0.0, %v761
        %v763 = vpop.f32.mrb[0].mxu0
        %764 = vmatprep.mubr.f32.mxu0 0.0
        %765 = vmatmul.mubr.f32.gmra.mrb[0].mxu0 %v355
        %v766 = vpop.f32.mrb[0].mxu0
        %v767 = vadd.f32 0.0, %v766
        %v768 = vpop.f32.mrb[0].mxu0
        %769 = vmatprep.mubr.f32.mxu0 0.0
        %770 = vmatmul.mubr.f32.gmra.mrb[0].mxu0 %v358
        %v771 = vpop.f32.mrb[0].mxu0
        %v772 = vadd.f32 0.0, %v771
        %v773 = vpop.f32.mrb[0].mxu0
        %774 = vmatprep.mubr.f32.mxu0 0.0
        %775 = vmatmul.mubr.f32.gmra.mrb[0].mxu0 %v361
        %v776 = vpop.f32.mrb[0].mxu0
        %v777 = vadd.f32 0.0, %v776
        %v778 = vpop.f32.mrb[0].mxu0
        %779 = vmatprep.mubr.f32.mxu0 0.0
        %780 = vmatmul.mubr.f32.gmra.mrb[0].mxu0 %v364
        %v781 = vpop.f32.mrb[0].mxu0
        %v782 = vadd.f32 0.0, %v781
        %v783 = vpop.f32.mrb[0].mxu0
        %784 = vmatprep.mubr.f32.mxu0 0.0
        %785 = vmatmul.mubr.f32.gmra.mrb[0].mxu0 %v367
        %v786 = vpop.f32.mrb[0].mxu0
        %v787 = vadd.f32 0.0, %v786
        %v788 = vpop.f32.mrb[0].mxu0
        %789 = vmatprep.mubr.f32.mxu0 0.0
        %790 = vmatmul.mubr.f32.gmra.mrb[0].mxu0 %v370
        %v791 = vpop.f32.mrb[0].mxu0
        %v792 = vadd.f32 0.0, %v791
        %v793 = vpop.f32.mrb[0].mxu0
        %794 = vmatprep.mubr.f32.mxu0 0.0
        %795 = vmatmul.mubr.f32.gmra.mrb[0].mxu0 %v373
        %v796 = vpop.f32.mrb[0].mxu0
        %v797 = vadd.f32 0.0, %v796
        %v798 = vpop.f32.mrb[0].mxu0
        %799 = vmatprep.mubr.f32.mxu0 0.0
        %800 = vmatmul.mubr.f32.gmra.mrb[0].mxu0 %v376
        %v801 = vpop.f32.mrb[0].mxu0
        %v802 = vadd.f32 0.0, %v801
        %v803 = vpop.f32.mrb[0].mxu0
        %804 = vmatprep.mubr.f32.mxu0 0.0
        %805 = vmatmul.mubr.f32.gmra.mrb[0].mxu0 %v379
        %v806 = vpop.f32.mrb[0].mxu0
        %v807 = vadd.f32 0.0, %v806
        %v808 = vpop.f32.mrb[0].mxu0
        %809 = vmatprep.mubr.f32.mxu0 0.0
        %810 = vmatmul.mubr.f32.gmra.mrb[0].mxu0 %v382
        %v811 = vpop.f32.mrb[0].mxu0
        %v812 = vadd.f32 0.0, %v811
        %v813 = vpop.f32.mrb[0].mxu0
        %814 = vmatprep.mubr.f32.mxu0 0.0
        %815 = vmatmul.mubr.f32.gmra.mrb[0].mxu0 %v385
        %v816 = vpop.f32.mrb[0].mxu0
        %v817 = vadd.f32 0.0, %v816
        %v818 = vpop.f32.mrb[0].mxu0
        %819 = vmatprep.mubr.f32.mxu0 0.0
        %820 = vmatmul.mubr.f32.gmra.mrb[0].mxu0 %v388
        %v821 = vpop.f32.mrb[0].mxu0
        %v822 = vadd.f32 0.0, %v821
        %v823 = vpop.f32.mrb[0].mxu0
        %824 = vmatprep.mubr.f32.mxu0 0.0
        %825 = vmatmul.mubr.f32.gmra.mrb[0].mxu0 %v391
        %v826 = vpop.f32.mrb[0].mxu0
        %v827 = vadd.f32 0.0, %v826
        %v828 = vpop.f32.mrb[0].mxu0
        %829 = vmatprep.mubr.f32.mxu0 0.0
        %830 = vmatmul.mubr.f32.gmra.mrb[0].mxu0 %v394
        %v831 = vpop.f32.mrb[0].mxu0
        %v832 = vadd.f32 0.0, %v831
        %v833 = vpop.f32.mrb[0].mxu0
        %834 = vmatprep.mubr.f32.mxu0 0.0
        %835 = vmatmul.mubr.f32.gmra.mrb[0].mxu0 %v397
        %v836 = vpop.f32.mrb[0].mxu0
        %v837 = vadd.f32 0.0, %v836
        %v838 = vpop.f32.mrb[0].mxu0
        %839 = vmatprep.mubr.f32.mxu0 0.0
        %840 = vmatmul.mubr.f32.gmra.mrb[0].mxu0 %v400
        %v841 = vpop.f32.mrb[0].mxu0
        %v842 = vadd.f32 0.0, %v841
        %v843 = vpop.f32.mrb[0].mxu0
        %844 = vmatprep.mubr.f32.mxu0 0.0
        %845 = vmatmul.mubr.f32.gmra.mrb[0].mxu0 %v403
        %v846 = vpop.f32.mrb[0].mxu0
        %v847 = vadd.f32 0.0, %v846
        %v848 = vpop.f32.mrb[0].mxu0
        %849 = vmatprep.mubr.f32.mxu0 0.0
        %850 = vmatmul.mubr.f32.gmra.mrb[0].mxu0 %v406
        %v851 = vpop.f32.mrb[0].mxu0
        %v852 = vadd.f32 0.0, %v851
        %v853 = vpop.f32.mrb[0].mxu0
        %854 = vmatprep.mubr.f32.mxu0 0.0
        %855 = vmatmul.mubr.f32.gmra.mrb[0].mxu0 %v409
        %v856 = vpop.f32.mrb[0].mxu0
        %v857 = vadd.f32 0.0, %v856
        %v858 = vpop.f32.mrb[0].mxu0
        %859 = vmatprep.mubr.f32.mxu0 0.0
        %860 = vmatmul.mubr.f32.gmra.mrb[0].mxu0 %v412
        %v861 = vpop.f32.mrb[0].mxu0
        %v862 = vadd.f32 0.0, %v861
        %v863 = vpop.f32.mrb[0].mxu0
        %864 = vmatprep.mubr.f32.mxu0 0.0
        %865 = vmatmul.mubr.f32.gmra.mrb[0].mxu0 %v415
        %v866 = vpop.f32.mrb[0].mxu0
        %v867 = vadd.f32 0.0, %v866
        %v868 = vpop.f32.mrb[0].mxu0
        %869 = vmatprep.mubr.f32.mxu0 0.0
        %870 = vmatmul.mubr.f32.gmra.mrb[0].mxu0 %v418
        %v871 = vpop.f32.mrb[0].mxu0
        %v872 = vadd.f32 0.0, %v871
        %v873 = vpop.f32.mrb[0].mxu0
        %874 = vmatprep.mubr.f32.mxu0 0.0
        %875 = vmatmul.mubr.f32.gmra.mrb[0].mxu0 %v421
        %v876 = vpop.f32.mrb[0].mxu0
        %v877 = vadd.f32 0.0, %v876
        %v878 = vpop.f32.mrb[0].mxu0
        %879 = vmatprep.mubr.f32.mxu0 0.0
        %880 = vmatmul.mubr.f32.gmra.mrb[0].mxu0 %v424
        %v881 = vpop.f32.mrb[0].mxu0
        %v882 = vadd.f32 0.0, %v881
        %v883 = vpop.f32.mrb[0].mxu0
        %884 = vdwg.mxu0
        %v885 = vlaneseq
        %v886 = vshrl.u32 %v885, 7
        %v887 = vsub.s32 0, %v886
        %v888 = vrot.slane %v727, %v887
        %v889 = vlaneseq
        %v890 = vshrl.u32 %v889, 7
        %v891 = vsub.s32 0, %v890
        %v892 = vrot.slane %v732, %v891
        %v893 = vlaneseq
        %v894 = vshrl.u32 %v893, 7
        %v895 = vsub.s32 0, %v894
        %v896 = vrot.slane %v737, %v895
        %v897 = vlaneseq
        %v898 = vshrl.u32 %v897, 7
        %v899 = vsub.s32 0, %v898
        %v900 = vrot.slane %v742, %v899
        %v901 = vlaneseq
        %v902 = vshrl.u32 %v901, 7
        %v903 = vsub.s32 0, %v902
        %v904 = vrot.slane %v747, %v903
        %v905 = vlaneseq
        %v906 = vshrl.u32 %v905, 7
        %v907 = vsub.s32 0, %v906
        %v908 = vrot.slane %v752, %v907
        %v909 = vlaneseq
        %v910 = vshrl.u32 %v909, 7
        %v911 = vsub.s32 0, %v910
        %v912 = vrot.slane %v757, %v911
        %v913 = vlaneseq
        %v914 = vshrl.u32 %v913, 7
        %v915 = vsub.s32 0, %v914
        %v916 = vrot.slane %v762, %v915
        %v917 = vlaneseq
        %v918 = vshrl.u32 %v917, 7
        %v919 = vsub.s32 0, %v918
        %v920 = vrot.slane %v767, %v919
        %v921 = vlaneseq
        %v922 = vshrl.u32 %v921, 7
        %v923 = vsub.s32 0, %v922
        %v924 = vrot.slane %v772, %v923
        %v925 = vlaneseq
        %v926 = vshrl.u32 %v925, 7
        %v927 = vsub.s32 0, %v926
        %v928 = vrot.slane %v777, %v927
        %v929 = vlaneseq
        %v930 = vshrl.u32 %v929, 7
        %v931 = vsub.s32 0, %v930
        %v932 = vrot.slane %v782, %v931
        %v933 = vlaneseq
        %v934 = vshrl.u32 %v933, 7
        %v935 = vsub.s32 0, %v934
        %v936 = vrot.slane %v787, %v935
        %v937 = vlaneseq
        %v938 = vshrl.u32 %v937, 7
        %v939 = vsub.s32 0, %v938
        %v940 = vrot.slane %v792, %v939
        %v941 = vlaneseq
        %v942 = vshrl.u32 %v941, 7
        %v943 = vsub.s32 0, %v942
        %v944 = vrot.slane %v797, %v943
        %v945 = vlaneseq
        %v946 = vshrl.u32 %v945, 7
        %v947 = vsub.s32 0, %v946
        %v948 = vrot.slane %v802, %v947
        %v949 = vlaneseq
        %v950 = vshrl.u32 %v949, 7
        %v951 = vsub.s32 0, %v950
        %v952 = vrot.slane %v807, %v951
        %v953 = vlaneseq
        %v954 = vshrl.u32 %v953, 7
        %v955 = vsub.s32 0, %v954
        %v956 = vrot.slane %v812, %v955
        %v957 = vlaneseq
        %v958 = vshrl.u32 %v957, 7
        %v959 = vsub.s32 0, %v958
        %v960 = vrot.slane %v817, %v959
        %v961 = vlaneseq
        %v962 = vshrl.u32 %v961, 7
        %v963 = vsub.s32 0, %v962
        %v964 = vrot.slane %v822, %v963
        %v965 = vlaneseq
        %v966 = vshrl.u32 %v965, 7
        %v967 = vsub.s32 0, %v966
        %v968 = vrot.slane %v827, %v967
        %v969 = vlaneseq
        %v970 = vshrl.u32 %v969, 7
        %v971 = vsub.s32 0, %v970
        %v972 = vrot.slane %v832, %v971
        %v973 = vlaneseq
        %v974 = vshrl.u32 %v973, 7
        %v975 = vsub.s32 0, %v974
        %v976 = vrot.slane %v837, %v975
        %v977 = vlaneseq
        %v978 = vshrl.u32 %v977, 7
        %v979 = vsub.s32 0, %v978
        %v980 = vrot.slane %v842, %v979
        %v981 = vlaneseq
        %v982 = vshrl.u32 %v981, 7
        %v983 = vsub.s32 0, %v982
        %v984 = vrot.slane %v847, %v983
        %v985 = vlaneseq
        %v986 = vshrl.u32 %v985, 7
        %v987 = vsub.s32 0, %v986
        %v988 = vrot.slane %v852, %v987
        %v989 = vlaneseq
        %v990 = vshrl.u32 %v989, 7
        %v991 = vsub.s32 0, %v990
        %v992 = vrot.slane %v857, %v991
        %v993 = vlaneseq
        %v994 = vshrl.u32 %v993, 7
        %v995 = vsub.s32 0, %v994
        %v996 = vrot.slane %v862, %v995
        %v997 = vlaneseq
        %v998 = vshrl.u32 %v997, 7
        %v999 = vsub.s32 0, %v998
        %v1000 = vrot.slane %v867, %v999
        %v1001 = vlaneseq
        %v1002 = vshrl.u32 %v1001, 7
        %v1003 = vsub.s32 0, %v1002
        %v1004 = vrot.slane %v872, %v1003
        %v1005 = vlaneseq
        %v1006 = vshrl.u32 %v1005, 7
        %v1007 = vsub.s32 0, %v1006
        %v1008 = vrot.slane %v877, %v1007
        %v1009 = vlaneseq
        %v1010 = vshrl.u32 %v1009, 7
        %v1011 = vsub.s32 0, %v1010
        %v1012 = vrot.slane %v882, %v1011
        %1045 = vrot.lane.b32.xlu0 %v727, 127
        %v1046 = vpop.permute.xlu0 %1045
        %1047 = vrot.lane.b32.xlu0 %v732, 127
        %v1048 = vpop.permute.xlu0 %1047
        %1049 = vrot.lane.b32.xlu0 %v737, 127
        %v1050 = vpop.permute.xlu0 %1049
        %1051 = vrot.lane.b32.xlu0 %v742, 127
        %v1052 = vpop.permute.xlu0 %1051
        %1053 = vrot.lane.b32.xlu0 %v747, 127
        %v1054 = vpop.permute.xlu0 %1053
        %1055 = vrot.lane.b32.xlu0 %v752, 127
        %v1056 = vpop.permute.xlu0 %1055
        %1057 = vrot.lane.b32.xlu0 %v757, 127
        %v1058 = vpop.permute.xlu0 %1057
        %1059 = vrot.lane.b32.xlu0 %v762, 127
        %v1060 = vpop.permute.xlu0 %1059
        %1061 = vrot.lane.b32.xlu0 %v767, 127
        %v1062 = vpop.permute.xlu0 %1061
        %1063 = vrot.lane.b32.xlu0 %v772, 127
        %v1064 = vpop.permute.xlu0 %1063
        %1065 = vrot.lane.b32.xlu0 %v777, 127
        %v1066 = vpop.permute.xlu0 %1065
        %1067 = vrot.lane.b32.xlu0 %v782, 127
        %v1068 = vpop.permute.xlu0 %1067
        %1069 = vrot.lane.b32.xlu0 %v787, 127
        %v1070 = vpop.permute.xlu0 %1069
        %1071 = vrot.lane.b32.xlu0 %v792, 127
        %v1072 = vpop.permute.xlu0 %1071
        %1073 = vrot.lane.b32.xlu0 %v797, 127
        %v1074 = vpop.permute.xlu0 %1073
        %1075 = vrot.lane.b32.xlu0 %v802, 127
        %v1076 = vpop.permute.xlu0 %1075
        %1077 = vrot.lane.b32.xlu0 %v807, 127
        %v1078 = vpop.permute.xlu0 %1077
        %1079 = vrot.lane.b32.xlu0 %v812, 127
        %v1080 = vpop.permute.xlu0 %1079
        %1081 = vrot.lane.b32.xlu0 %v817, 127
        %v1082 = vpop.permute.xlu0 %1081
        %1083 = vrot.lane.b32.xlu0 %v822, 127
        %v1084 = vpop.permute.xlu0 %1083
        %1085 = vrot.lane.b32.xlu0 %v827, 127
        %v1086 = vpop.permute.xlu0 %1085
        %1087 = vrot.lane.b32.xlu0 %v832, 127
        %v1088 = vpop.permute.xlu0 %1087
        %1089 = vrot.lane.b32.xlu0 %v837, 127
        %v1090 = vpop.permute.xlu0 %1089
        %1091 = vrot.lane.b32.xlu0 %v842, 127
        %v1092 = vpop.permute.xlu0 %1091
        %1093 = vrot.lane.b32.xlu0 %v847, 127
        %v1094 = vpop.permute.xlu0 %1093
        %1095 = vrot.lane.b32.xlu0 %v852, 127
        %v1096 = vpop.permute.xlu0 %1095
        %1097 = vrot.lane.b32.xlu0 %v857, 127
        %v1098 = vpop.permute.xlu0 %1097
        %1099 = vrot.lane.b32.xlu0 %v862, 127
        %v1100 = vpop.permute.xlu0 %1099
        %1101 = vrot.lane.b32.xlu0 %v867, 127
        %v1102 = vpop.permute.xlu0 %1101
        %1103 = vrot.lane.b32.xlu0 %v872, 127
        %v1104 = vpop.permute.xlu0 %1103
        %1105 = vrot.lane.b32.xlu0 %v877, 127
        %v1106 = vpop.permute.xlu0 %1105
        %1107 = vrot.lane.b32.xlu0 %v882, 127
        %v1108 = vpop.permute.xlu0 %1107
        %v1141 = vadd.f32 %v888, %v1046
        %v1142 = vadd.f32 %v892, %v1048
        %v1143 = vadd.f32 %v896, %v1050
        %v1144 = vadd.f32 %v900, %v1052
        %v1145 = vadd.f32 %v904, %v1054
        %v1146 = vadd.f32 %v908, %v1056
        %v1147 = vadd.f32 %v912, %v1058
        %v1148 = vadd.f32 %v916, %v1060
        %v1149 = vadd.f32 %v920, %v1062
        %v1150 = vadd.f32 %v924, %v1064
        %v1151 = vadd.f32 %v928, %v1066
        %v1152 = vadd.f32 %v932, %v1068
        %v1153 = vadd.f32 %v936, %v1070
        %v1154 = vadd.f32 %v940, %v1072
        %v1155 = vadd.f32 %v944, %v1074
        %v1156 = vadd.f32 %v948, %v1076
        %v1157 = vadd.f32 %v952, %v1078
        %v1158 = vadd.f32 %v956, %v1080
        %v1159 = vadd.f32 %v960, %v1082
        %v1160 = vadd.f32 %v964, %v1084
        %v1161 = vadd.f32 %v968, %v1086
        %v1162 = vadd.f32 %v972, %v1088
        %v1163 = vadd.f32 %v976, %v1090
        %v1164 = vadd.f32 %v980, %v1092
        %v1165 = vadd.f32 %v984, %v1094
        %v1166 = vadd.f32 %v988, %v1096
        %v1167 = vadd.f32 %v992, %v1098
        %v1168 = vadd.f32 %v996, %v1100
        %v1169 = vadd.f32 %v1000, %v1102
        %v1170 = vadd.f32 %v1004, %v1104
        %v1171 = vadd.f32 %v1008, %v1106
        %v1172 = vadd.f32 %v1012, %v1108
        %vm1173 = vcmp.gt.f32.partialorder %v1141, 0.0
        %vm1174 = vcmp.gt.f32.partialorder %v1142, 0.0
        %vm1175 = vcmp.gt.f32.partialorder %v1143, 0.0
        %vm1176 = vcmp.gt.f32.partialorder %v1144, 0.0
        %vm1177 = vcmp.gt.f32.partialorder %v1145, 0.0
        %vm1178 = vcmp.gt.f32.partialorder %v1146, 0.0
        %vm1179 = vcmp.gt.f32.partialorder %v1147, 0.0
        %vm1180 = vcmp.gt.f32.partialorder %v1148, 0.0
        %vm1181 = vcmp.gt.f32.partialorder %v1149, 0.0
        %vm1182 = vcmp.gt.f32.partialorder %v1150, 0.0
        %vm1183 = vcmp.gt.f32.partialorder %v1151, 0.0
        %vm1184 = vcmp.gt.f32.partialorder %v1152, 0.0
        %vm1185 = vcmp.gt.f32.partialorder %v1153, 0.0
        %vm1186 = vcmp.gt.f32.partialorder %v1154, 0.0
        %vm1187 = vcmp.gt.f32.partialorder %v1155, 0.0
        %vm1188 = vcmp.gt.f32.partialorder %v1156, 0.0
        %vm1189 = vcmp.gt.f32.partialorder %v1157, 0.0
        %vm1190 = vcmp.gt.f32.partialorder %v1158, 0.0
        %vm1191 = vcmp.gt.f32.partialorder %v1159, 0.0
        %vm1192 = vcmp.gt.f32.partialorder %v1160, 0.0
        %vm1193 = vcmp.gt.f32.partialorder %v1161, 0.0
        %vm1194 = vcmp.gt.f32.partialorder %v1162, 0.0
        %vm1195 = vcmp.gt.f32.partialorder %v1163, 0.0
        %vm1196 = vcmp.gt.f32.partialorder %v1164, 0.0
        %vm1197 = vcmp.gt.f32.partialorder %v1165, 0.0
        %vm1198 = vcmp.gt.f32.partialorder %v1166, 0.0
        %vm1199 = vcmp.gt.f32.partialorder %v1167, 0.0
        %vm1200 = vcmp.gt.f32.partialorder %v1168, 0.0
        %vm1201 = vcmp.gt.f32.partialorder %v1169, 0.0
        %vm1202 = vcmp.gt.f32.partialorder %v1170, 0.0
        %vm1203 = vcmp.gt.f32.partialorder %v1171, 0.0
        %vm1204 = vcmp.gt.f32.partialorder %v1172, 0.0
        %v1205 = vmul.f32 %v1141, 0.2
        %v1206 = vmul.f32 %v1142, 0.2
        %v1207 = vmul.f32 %v1143, 0.2
        %v1208 = vmul.f32 %v1144, 0.2
        %v1209 = vmul.f32 %v1145, 0.2
        %v1210 = vmul.f32 %v1146, 0.2
        %v1211 = vmul.f32 %v1147, 0.2
        %v1212 = vmul.f32 %v1148, 0.2
        %v1213 = vmul.f32 %v1149, 0.2
        %v1214 = vmul.f32 %v1150, 0.2
        %v1215 = vmul.f32 %v1151, 0.2
        %v1216 = vmul.f32 %v1152, 0.2
        %v1217 = vmul.f32 %v1153, 0.2
        %v1218 = vmul.f32 %v1154, 0.2
        %v1219 = vmul.f32 %v1155, 0.2
        %v1220 = vmul.f32 %v1156, 0.2
        %v1221 = vmul.f32 %v1157, 0.2
        %v1222 = vmul.f32 %v1158, 0.2
        %v1223 = vmul.f32 %v1159, 0.2
        %v1224 = vmul.f32 %v1160, 0.2
        %v1225 = vmul.f32 %v1161, 0.2
        %v1226 = vmul.f32 %v1162, 0.2
        %v1227 = vmul.f32 %v1163, 0.2
        %v1228 = vmul.f32 %v1164, 0.2
        %v1229 = vmul.f32 %v1165, 0.2
        %v1230 = vmul.f32 %v1166, 0.2
        %v1231 = vmul.f32 %v1167, 0.2
        %v1232 = vmul.f32 %v1168, 0.2
        %v1233 = vmul.f32 %v1169, 0.2
        %v1234 = vmul.f32 %v1170, 0.2
        %v1235 = vmul.f32 %v1171, 0.2
        %v1236 = vmul.f32 %v1172, 0.2
        %v1237 = vsel %vm1173, %v1141, %v1205
        %v1238 = vsel %vm1174, %v1142, %v1206
        %v1239 = vsel %vm1175, %v1143, %v1207
        %v1240 = vsel %vm1176, %v1144, %v1208
        %v1241 = vsel %vm1177, %v1145, %v1209
        %v1242 = vsel %vm1178, %v1146, %v1210
        %v1243 = vsel %vm1179, %v1147, %v1211
        %v1244 = vsel %vm1180, %v1148, %v1212
        %v1245 = vsel %vm1181, %v1149, %v1213
        %v1246 = vsel %vm1182, %v1150, %v1214
        %v1247 = vsel %vm1183, %v1151, %v1215
        %v1248 = vsel %vm1184, %v1152, %v1216
        %v1249 = vsel %vm1185, %v1153, %v1217
        %v1250 = vsel %vm1186, %v1154, %v1218
        %v1251 = vsel %vm1187, %v1155, %v1219
        %v1252 = vsel %vm1188, %v1156, %v1220
        %v1253 = vsel %vm1189, %v1157, %v1221
        %v1254 = vsel %vm1190, %v1158, %v1222
        %v1255 = vsel %vm1191, %v1159, %v1223
        %v1256 = vsel %vm1192, %v1160, %v1224
        %v1257 = vsel %vm1193, %v1161, %v1225
        %v1258 = vsel %vm1194, %v1162, %v1226
        %v1259 = vsel %vm1195, %v1163, %v1227
        %v1260 = vsel %vm1196, %v1164, %v1228
        %v1261 = vsel %vm1197, %v1165, %v1229
        %v1262 = vsel %vm1198, %v1166, %v1230
        %v1263 = vsel %vm1199, %v1167, %v1231
        %v1264 = vsel %vm1200, %v1168, %v1232
        %v1265 = vsel %vm1201, %v1169, %v1233
        %v1266 = vsel %vm1202, %v1170, %v1234
        %v1267 = vsel %vm1203, %v1171, %v1235
        %v1268 = vsel %vm1204, %v1172, %v1236
        %v1269 = vlaneseq
        %v1270 = vshrl.u32 %v1269, 7
        %vm1271 = vcmp.ge.s32.totalorder %v1270, 1
        %vm1272 = vcmp.lt.s32.totalorder %v1270, 6
        %vm1273 = vmand %vm1271, %vm1272
        %v1274 = vsel %vm1273, %v1237, -1e+30
        %v1275 = vsel %vm1273, %v1238, -1e+30
        %v1276 = vsel %vm1273, %v1239, -1e+30
        %v1277 = vsel %vm1273, %v1240, -1e+30
        %v1278 = vsel %vm1273, %v1241, -1e+30
        %v1279 = vsel %vm1273, %v1242, -1e+30
        %v1280 = vsel %vm1273, %v1243, -1e+30
        %v1281 = vsel %vm1273, %v1244, -1e+30
        %v1282 = vsel %vm1273, %v1245, -1e+30
        %v1283 = vsel %vm1273, %v1246, -1e+30
        %v1284 = vsel %vm1273, %v1247, -1e+30
        %v1285 = vsel %vm1273, %v1248, -1e+30
        %v1286 = vsel %vm1273, %v1249, -1e+30
        %v1287 = vsel %vm1273, %v1250, -1e+30
        %v1288 = vsel %vm1273, %v1251, -1e+30
        %v1289 = vsel %vm1273, %v1252, -1e+30
        %v1290 = vsel %vm1273, %v1253, -1e+30
        %v1291 = vsel %vm1273, %v1254, -1e+30
        %v1292 = vsel %vm1273, %v1255, -1e+30
        %v1293 = vsel %vm1273, %v1256, -1e+30
        %v1294 = vsel %vm1273, %v1257, -1e+30
        %v1295 = vsel %vm1273, %v1258, -1e+30
        %v1296 = vsel %vm1273, %v1259, -1e+30
        %v1297 = vsel %vm1273, %v1260, -1e+30
        %v1298 = vsel %vm1273, %v1261, -1e+30
        %v1299 = vsel %vm1273, %v1262, -1e+30
        %v1300 = vsel %vm1273, %v1263, -1e+30
        %v1301 = vsel %vm1273, %v1264, -1e+30
        %v1302 = vsel %vm1273, %v1265, -1e+30
        %v1303 = vsel %vm1273, %v1266, -1e+30
        %v1304 = vsel %vm1273, %v1267, -1e+30
        %v1305 = vsel %vm1273, %v1268, -1e+30
        %vm1306 = vcmask 7168
        %v1307 = vsel %vm1306, %v1274, -inf
        %v1308 = vrot.slane %v1307, 4
        %v1309 = vmax.f32 %v1307, %v1308
        %v1310 = vrot.slane %v1309, 2
        %v1311 = vmax.f32 %v1309, %v1310
        %v1312 = vrot.slane %v1311, 1
        %v1313 = vmax.f32 %v1311, %v1312
        %v1314 = vsel %vm1306, %v1275, -inf
        %v1315 = vrot.slane %v1314, 4
        %v1316 = vmax.f32 %v1314, %v1315
        %v1317 = vrot.slane %v1316, 2
        %v1318 = vmax.f32 %v1316, %v1317
        %v1319 = vrot.slane %v1318, 1
        %v1320 = vmax.f32 %v1318, %v1319
        %v1321 = vsel %vm1306, %v1276, -inf
        %v1322 = vrot.slane %v1321, 4
        %v1323 = vmax.f32 %v1321, %v1322
        %v1324 = vrot.slane %v1323, 2
        %v1325 = vmax.f32 %v1323, %v1324
        %v1326 = vrot.slane %v1325, 1
        %v1327 = vmax.f32 %v1325, %v1326
        %v1328 = vsel %vm1306, %v1277, -inf
        %v1329 = vrot.slane %v1328, 4
        %v1330 = vmax.f32 %v1328, %v1329
        %v1331 = vrot.slane %v1330, 2
        %v1332 = vmax.f32 %v1330, %v1331
        %v1333 = vrot.slane %v1332, 1
        %v1334 = vmax.f32 %v1332, %v1333
        %v1335 = vsel %vm1306, %v1278, -inf
        %v1336 = vrot.slane %v1335, 4
        %v1337 = vmax.f32 %v1335, %v1336
        %v1338 = vrot.slane %v1337, 2
        %v1339 = vmax.f32 %v1337, %v1338
        %v1340 = vrot.slane %v1339, 1
        %v1341 = vmax.f32 %v1339, %v1340
        %v1342 = vsel %vm1306, %v1279, -inf
        %v1343 = vrot.slane %v1342, 4
        %v1344 = vmax.f32 %v1342, %v1343
        %v1345 = vrot.slane %v1344, 2
        %v1346 = vmax.f32 %v1344, %v1345
        %v1347 = vrot.slane %v1346, 1
        %v1348 = vmax.f32 %v1346, %v1347
        %v1349 = vsel %vm1306, %v1280, -inf
        %v1350 = vrot.slane %v1349, 4
        %v1351 = vmax.f32 %v1349, %v1350
        %v1352 = vrot.slane %v1351, 2
        %v1353 = vmax.f32 %v1351, %v1352
        %v1354 = vrot.slane %v1353, 1
        %v1355 = vmax.f32 %v1353, %v1354
        %v1356 = vsel %vm1306, %v1281, -inf
        %v1357 = vrot.slane %v1356, 4
        %v1358 = vmax.f32 %v1356, %v1357
        %v1359 = vrot.slane %v1358, 2
        %v1360 = vmax.f32 %v1358, %v1359
        %v1361 = vrot.slane %v1360, 1
        %v1362 = vmax.f32 %v1360, %v1361
        %v1363 = vsel %vm1306, %v1282, -inf
        %v1364 = vrot.slane %v1363, 4
        %v1365 = vmax.f32 %v1363, %v1364
        %v1366 = vrot.slane %v1365, 2
        %v1367 = vmax.f32 %v1365, %v1366
        %v1368 = vrot.slane %v1367, 1
        %v1369 = vmax.f32 %v1367, %v1368
        %v1370 = vsel %vm1306, %v1283, -inf
        %v1371 = vrot.slane %v1370, 4
        %v1372 = vmax.f32 %v1370, %v1371
        %v1373 = vrot.slane %v1372, 2
        %v1374 = vmax.f32 %v1372, %v1373
        %v1375 = vrot.slane %v1374, 1
        %v1376 = vmax.f32 %v1374, %v1375
        %v1377 = vsel %vm1306, %v1284, -inf
        %v1378 = vrot.slane %v1377, 4
        %v1379 = vmax.f32 %v1377, %v1378
        %v1380 = vrot.slane %v1379, 2
        %v1381 = vmax.f32 %v1379, %v1380
        %v1382 = vrot.slane %v1381, 1
        %v1383 = vmax.f32 %v1381, %v1382
        %v1384 = vsel %vm1306, %v1285, -inf
        %v1385 = vrot.slane %v1384, 4
        %v1386 = vmax.f32 %v1384, %v1385
        %v1387 = vrot.slane %v1386, 2
        %v1388 = vmax.f32 %v1386, %v1387
        %v1389 = vrot.slane %v1388, 1
        %v1390 = vmax.f32 %v1388, %v1389
        %v1391 = vsel %vm1306, %v1286, -inf
        %v1392 = vrot.slane %v1391, 4
        %v1393 = vmax.f32 %v1391, %v1392
        %v1394 = vrot.slane %v1393, 2
        %v1395 = vmax.f32 %v1393, %v1394
        %v1396 = vrot.slane %v1395, 1
        %v1397 = vmax.f32 %v1395, %v1396
        %v1398 = vsel %vm1306, %v1287, -inf
        %v1399 = vrot.slane %v1398, 4
        %v1400 = vmax.f32 %v1398, %v1399
        %v1401 = vrot.slane %v1400, 2
        %v1402 = vmax.f32 %v1400, %v1401
        %v1403 = vrot.slane %v1402, 1
        %v1404 = vmax.f32 %v1402, %v1403
        %v1405 = vsel %vm1306, %v1288, -inf
        %v1406 = vrot.slane %v1405, 4
        %v1407 = vmax.f32 %v1405, %v1406
        %v1408 = vrot.slane %v1407, 2
        %v1409 = vmax.f32 %v1407, %v1408
        %v1410 = vrot.slane %v1409, 1
        %v1411 = vmax.f32 %v1409, %v1410
        %v1412 = vsel %vm1306, %v1289, -inf
        %v1413 = vrot.slane %v1412, 4
        %v1414 = vmax.f32 %v1412, %v1413
        %v1415 = vrot.slane %v1414, 2
        %v1416 = vmax.f32 %v1414, %v1415
        %v1417 = vrot.slane %v1416, 1
        %v1418 = vmax.f32 %v1416, %v1417
        %v1419 = vsel %vm1306, %v1290, -inf
        %v1420 = vrot.slane %v1419, 4
        %v1421 = vmax.f32 %v1419, %v1420
        %v1422 = vrot.slane %v1421, 2
        %v1423 = vmax.f32 %v1421, %v1422
        %v1424 = vrot.slane %v1423, 1
        %v1425 = vmax.f32 %v1423, %v1424
        %v1426 = vsel %vm1306, %v1291, -inf
        %v1427 = vrot.slane %v1426, 4
        %v1428 = vmax.f32 %v1426, %v1427
        %v1429 = vrot.slane %v1428, 2
        %v1430 = vmax.f32 %v1428, %v1429
        %v1431 = vrot.slane %v1430, 1
        %v1432 = vmax.f32 %v1430, %v1431
        %v1433 = vsel %vm1306, %v1292, -inf
        %v1434 = vrot.slane %v1433, 4
        %v1435 = vmax.f32 %v1433, %v1434
        %v1436 = vrot.slane %v1435, 2
        %v1437 = vmax.f32 %v1435, %v1436
        %v1438 = vrot.slane %v1437, 1
        %v1439 = vmax.f32 %v1437, %v1438
        %v1440 = vsel %vm1306, %v1293, -inf
        %v1441 = vrot.slane %v1440, 4
        %v1442 = vmax.f32 %v1440, %v1441
        %v1443 = vrot.slane %v1442, 2
        %v1444 = vmax.f32 %v1442, %v1443
        %v1445 = vrot.slane %v1444, 1
        %v1446 = vmax.f32 %v1444, %v1445
        %v1447 = vsel %vm1306, %v1294, -inf
        %v1448 = vrot.slane %v1447, 4
        %v1449 = vmax.f32 %v1447, %v1448
        %v1450 = vrot.slane %v1449, 2
        %v1451 = vmax.f32 %v1449, %v1450
        %v1452 = vrot.slane %v1451, 1
        %v1453 = vmax.f32 %v1451, %v1452
        %v1454 = vsel %vm1306, %v1295, -inf
        %v1455 = vrot.slane %v1454, 4
        %v1456 = vmax.f32 %v1454, %v1455
        %v1457 = vrot.slane %v1456, 2
        %v1458 = vmax.f32 %v1456, %v1457
        %v1459 = vrot.slane %v1458, 1
        %v1460 = vmax.f32 %v1458, %v1459
        %v1461 = vsel %vm1306, %v1296, -inf
        %v1462 = vrot.slane %v1461, 4
        %v1463 = vmax.f32 %v1461, %v1462
        %v1464 = vrot.slane %v1463, 2
        %v1465 = vmax.f32 %v1463, %v1464
        %v1466 = vrot.slane %v1465, 1
        %v1467 = vmax.f32 %v1465, %v1466
        %v1468 = vsel %vm1306, %v1297, -inf
        %v1469 = vrot.slane %v1468, 4
        %v1470 = vmax.f32 %v1468, %v1469
        %v1471 = vrot.slane %v1470, 2
        %v1472 = vmax.f32 %v1470, %v1471
        %v1473 = vrot.slane %v1472, 1
        %v1474 = vmax.f32 %v1472, %v1473
        %v1475 = vsel %vm1306, %v1298, -inf
        %v1476 = vrot.slane %v1475, 4
        %v1477 = vmax.f32 %v1475, %v1476
        %v1478 = vrot.slane %v1477, 2
        %v1479 = vmax.f32 %v1477, %v1478
        %v1480 = vrot.slane %v1479, 1
        %v1481 = vmax.f32 %v1479, %v1480
        %v1482 = vsel %vm1306, %v1299, -inf
        %v1483 = vrot.slane %v1482, 4
        %v1484 = vmax.f32 %v1482, %v1483
        %v1485 = vrot.slane %v1484, 2
        %v1486 = vmax.f32 %v1484, %v1485
        %v1487 = vrot.slane %v1486, 1
        %v1488 = vmax.f32 %v1486, %v1487
        %v1489 = vsel %vm1306, %v1300, -inf
        %v1490 = vrot.slane %v1489, 4
        %v1491 = vmax.f32 %v1489, %v1490
        %v1492 = vrot.slane %v1491, 2
        %v1493 = vmax.f32 %v1491, %v1492
        %v1494 = vrot.slane %v1493, 1
        %v1495 = vmax.f32 %v1493, %v1494
        %v1496 = vsel %vm1306, %v1301, -inf
        %v1497 = vrot.slane %v1496, 4
        %v1498 = vmax.f32 %v1496, %v1497
        %v1499 = vrot.slane %v1498, 2
        %v1500 = vmax.f32 %v1498, %v1499
        %v1501 = vrot.slane %v1500, 1
        %v1502 = vmax.f32 %v1500, %v1501
        %v1503 = vsel %vm1306, %v1302, -inf
        %v1504 = vrot.slane %v1503, 4
        %v1505 = vmax.f32 %v1503, %v1504
        %v1506 = vrot.slane %v1505, 2
        %v1507 = vmax.f32 %v1505, %v1506
        %v1508 = vrot.slane %v1507, 1
        %v1509 = vmax.f32 %v1507, %v1508
        %v1510 = vsel %vm1306, %v1303, -inf
        %v1511 = vrot.slane %v1510, 4
        %v1512 = vmax.f32 %v1510, %v1511
        %v1513 = vrot.slane %v1512, 2
        %v1514 = vmax.f32 %v1512, %v1513
        %v1515 = vrot.slane %v1514, 1
        %v1516 = vmax.f32 %v1514, %v1515
        %v1517 = vsel %vm1306, %v1304, -inf
        %v1518 = vrot.slane %v1517, 4
        %v1519 = vmax.f32 %v1517, %v1518
        %v1520 = vrot.slane %v1519, 2
        %v1521 = vmax.f32 %v1519, %v1520
        %v1522 = vrot.slane %v1521, 1
        %v1523 = vmax.f32 %v1521, %v1522
        %v1524 = vsel %vm1306, %v1305, -inf
        %v1525 = vrot.slane %v1524, 4
        %v1526 = vmax.f32 %v1524, %v1525
        %v1527 = vrot.slane %v1526, 2
        %v1528 = vmax.f32 %v1526, %v1527
        %v1529 = vrot.slane %v1528, 1
        %v1530 = vmax.f32 %v1528, %v1529
        %v1531 = vsub.f32 %v1274, %v1313
        %v1532 = vsub.f32 %v1275, %v1320
        %v1533 = vsub.f32 %v1276, %v1327
        %v1534 = vsub.f32 %v1277, %v1334
        %v1535 = vsub.f32 %v1278, %v1341
        %v1536 = vsub.f32 %v1279, %v1348
        %v1537 = vsub.f32 %v1280, %v1355
        %v1538 = vsub.f32 %v1281, %v1362
        %v1539 = vsub.f32 %v1282, %v1369
        %v1540 = vsub.f32 %v1283, %v1376
        %v1541 = vsub.f32 %v1284, %v1383
        %v1542 = vsub.f32 %v1285, %v1390
        %v1543 = vsub.f32 %v1286, %v1397
        %v1544 = vsub.f32 %v1287, %v1404
        %v1545 = vsub.f32 %v1288, %v1411
        %v1546 = vsub.f32 %v1289, %v1418
        %v1547 = vsub.f32 %v1290, %v1425
        %v1548 = vsub.f32 %v1291, %v1432
        %v1549 = vsub.f32 %v1292, %v1439
        %v1550 = vsub.f32 %v1293, %v1446
        %v1551 = vsub.f32 %v1294, %v1453
        %v1552 = vsub.f32 %v1295, %v1460
        %v1553 = vsub.f32 %v1296, %v1467
        %v1554 = vsub.f32 %v1297, %v1474
        %v1555 = vsub.f32 %v1298, %v1481
        %v1556 = vsub.f32 %v1299, %v1488
        %v1557 = vsub.f32 %v1300, %v1495
        %v1558 = vsub.f32 %v1301, %v1502
        %v1559 = vsub.f32 %v1302, %v1509
        %v1560 = vsub.f32 %v1303, %v1516
        %v1561 = vsub.f32 %v1304, %v1523
        %v1562 = vsub.f32 %v1305, %v1530
        %v1563 = vmul.f32 %v1531, 1.442695
        %v1564 = vpow.pop %v1563
        %v1565 = vmul.f32 %v1532, 1.442695
        %v1566 = vpow.pop %v1565
        %v1567 = vmul.f32 %v1533, 1.442695
        %v1568 = vpow.pop %v1567
        %v1569 = vmul.f32 %v1534, 1.442695
        %v1570 = vpow.pop %v1569
        %v1571 = vmul.f32 %v1535, 1.442695
        %v1572 = vpow.pop %v1571
        %v1573 = vmul.f32 %v1536, 1.442695
        %v1574 = vpow.pop %v1573
        %v1575 = vmul.f32 %v1537, 1.442695
        %v1576 = vpow.pop %v1575
        %v1577 = vmul.f32 %v1538, 1.442695
        %v1578 = vpow.pop %v1577
        %v1579 = vmul.f32 %v1539, 1.442695
        %v1580 = vpow.pop %v1579
        %v1581 = vmul.f32 %v1540, 1.442695
        %v1582 = vpow.pop %v1581
        %v1583 = vmul.f32 %v1541, 1.442695
        %v1584 = vpow.pop %v1583
        %v1585 = vmul.f32 %v1542, 1.442695
        %v1586 = vpow.pop %v1585
        %v1587 = vmul.f32 %v1543, 1.442695
        %v1588 = vpow.pop %v1587
        %v1589 = vmul.f32 %v1544, 1.442695
        %v1590 = vpow.pop %v1589
        %v1591 = vmul.f32 %v1545, 1.442695
        %v1592 = vpow.pop %v1591
        %v1593 = vmul.f32 %v1546, 1.442695
        %v1594 = vpow.pop %v1593
        %v1595 = vmul.f32 %v1547, 1.442695
        %v1596 = vpow.pop %v1595
        %v1597 = vmul.f32 %v1548, 1.442695
        %v1598 = vpow.pop %v1597
        %v1599 = vmul.f32 %v1549, 1.442695
        %v1600 = vpow.pop %v1599
        %v1601 = vmul.f32 %v1550, 1.442695
        %v1602 = vpow.pop %v1601
        %v1603 = vmul.f32 %v1551, 1.442695
        %v1604 = vpow.pop %v1603
        %v1605 = vmul.f32 %v1552, 1.442695
        %v1606 = vpow.pop %v1605
        %v1607 = vmul.f32 %v1553, 1.442695
        %v1608 = vpow.pop %v1607
        %v1609 = vmul.f32 %v1554, 1.442695
        %v1610 = vpow.pop %v1609
        %v1611 = vmul.f32 %v1555, 1.442695
        %v1612 = vpow.pop %v1611
        %v1613 = vmul.f32 %v1556, 1.442695
        %v1614 = vpow.pop %v1613
        %v1615 = vmul.f32 %v1557, 1.442695
        %v1616 = vpow.pop %v1615
        %v1617 = vmul.f32 %v1558, 1.442695
        %v1618 = vpow.pop %v1617
        %v1619 = vmul.f32 %v1559, 1.442695
        %v1620 = vpow.pop %v1619
        %v1621 = vmul.f32 %v1560, 1.442695
        %v1622 = vpow.pop %v1621
        %v1623 = vmul.f32 %v1561, 1.442695
        %v1624 = vpow.pop %v1623
        %v1625 = vmul.f32 %v1562, 1.442695
        %v1626 = vpow.pop %v1625
        %v1627 = vsel %vm1273, 1, 0
        %v1628 = vcvt.s32.f32 %v1627
        %v1629 = vmul.f32 %v1564, %v1628
        %v1630 = vmul.f32 %v1566, %v1628
        %v1631 = vmul.f32 %v1568, %v1628
        %v1632 = vmul.f32 %v1570, %v1628
        %v1633 = vmul.f32 %v1572, %v1628
        %v1634 = vmul.f32 %v1574, %v1628
        %v1635 = vmul.f32 %v1576, %v1628
        %v1636 = vmul.f32 %v1578, %v1628
        %v1637 = vmul.f32 %v1580, %v1628
        %v1638 = vmul.f32 %v1582, %v1628
        %v1639 = vmul.f32 %v1584, %v1628
        %v1640 = vmul.f32 %v1586, %v1628
        %v1641 = vmul.f32 %v1588, %v1628
        %v1642 = vmul.f32 %v1590, %v1628
        %v1643 = vmul.f32 %v1592, %v1628
        %v1644 = vmul.f32 %v1594, %v1628
        %v1645 = vmul.f32 %v1596, %v1628
        %v1646 = vmul.f32 %v1598, %v1628
        %v1647 = vmul.f32 %v1600, %v1628
        %v1648 = vmul.f32 %v1602, %v1628
        %v1649 = vmul.f32 %v1604, %v1628
        %v1650 = vmul.f32 %v1606, %v1628
        %v1651 = vmul.f32 %v1608, %v1628
        %v1652 = vmul.f32 %v1610, %v1628
        %v1653 = vmul.f32 %v1612, %v1628
        %v1654 = vmul.f32 %v1614, %v1628
        %v1655 = vmul.f32 %v1616, %v1628
        %v1656 = vmul.f32 %v1618, %v1628
        %v1657 = vmul.f32 %v1620, %v1628
        %v1658 = vmul.f32 %v1622, %v1628
        %v1659 = vmul.f32 %v1624, %v1628
        %v1660 = vmul.f32 %v1626, %v1628
        %v1661 = vsel %vm1306, %v1629, 0.0
        %v1662 = vrot.slane %v1661, 4
        %v1663 = vadd.f32 %v1661, %v1662
        %v1664 = vrot.slane %v1663, 2
        %v1665 = vadd.f32 %v1663, %v1664
        %v1666 = vrot.slane %v1665, 1
        %v1667 = vadd.f32 %v1665, %v1666
        %v1668 = vsel %vm1306, %v1630, 0.0
        %v1669 = vrot.slane %v1668, 4
        %v1670 = vadd.f32 %v1668, %v1669
        %v1671 = vrot.slane %v1670, 2
        %v1672 = vadd.f32 %v1670, %v1671
        %v1673 = vrot.slane %v1672, 1
        %v1674 = vadd.f32 %v1672, %v1673
        %v1675 = vsel %vm1306, %v1631, 0.0
        %v1676 = vrot.slane %v1675, 4
        %v1677 = vadd.f32 %v1675, %v1676
        %v1678 = vrot.slane %v1677, 2
        %v1679 = vadd.f32 %v1677, %v1678
        %v1680 = vrot.slane %v1679, 1
        %v1681 = vadd.f32 %v1679, %v1680
        %v1682 = vsel %vm1306, %v1632, 0.0
        %v1683 = vrot.slane %v1682, 4
        %v1684 = vadd.f32 %v1682, %v1683
        %v1685 = vrot.slane %v1684, 2
        %v1686 = vadd.f32 %v1684, %v1685
        %v1687 = vrot.slane %v1686, 1
        %v1688 = vadd.f32 %v1686, %v1687
        %v1689 = vsel %vm1306, %v1633, 0.0
        %v1690 = vrot.slane %v1689, 4
        %v1691 = vadd.f32 %v1689, %v1690
        %v1692 = vrot.slane %v1691, 2
        %v1693 = vadd.f32 %v1691, %v1692
        %v1694 = vrot.slane %v1693, 1
        %v1695 = vadd.f32 %v1693, %v1694
        %v1696 = vsel %vm1306, %v1634, 0.0
        %v1697 = vrot.slane %v1696, 4
        %v1698 = vadd.f32 %v1696, %v1697
        %v1699 = vrot.slane %v1698, 2
        %v1700 = vadd.f32 %v1698, %v1699
        %v1701 = vrot.slane %v1700, 1
        %v1702 = vadd.f32 %v1700, %v1701
        %v1703 = vsel %vm1306, %v1635, 0.0
        %v1704 = vrot.slane %v1703, 4
        %v1705 = vadd.f32 %v1703, %v1704
        %v1706 = vrot.slane %v1705, 2
        %v1707 = vadd.f32 %v1705, %v1706
        %v1708 = vrot.slane %v1707, 1
        %v1709 = vadd.f32 %v1707, %v1708
        %v1710 = vsel %vm1306, %v1636, 0.0
        %v1711 = vrot.slane %v1710, 4
        %v1712 = vadd.f32 %v1710, %v1711
        %v1713 = vrot.slane %v1712, 2
        %v1714 = vadd.f32 %v1712, %v1713
        %v1715 = vrot.slane %v1714, 1
        %v1716 = vadd.f32 %v1714, %v1715
        %v1717 = vsel %vm1306, %v1637, 0.0
        %v1718 = vrot.slane %v1717, 4
        %v1719 = vadd.f32 %v1717, %v1718
        %v1720 = vrot.slane %v1719, 2
        %v1721 = vadd.f32 %v1719, %v1720
        %v1722 = vrot.slane %v1721, 1
        %v1723 = vadd.f32 %v1721, %v1722
        %v1724 = vsel %vm1306, %v1638, 0.0
        %v1725 = vrot.slane %v1724, 4
        %v1726 = vadd.f32 %v1724, %v1725
        %v1727 = vrot.slane %v1726, 2
        %v1728 = vadd.f32 %v1726, %v1727
        %v1729 = vrot.slane %v1728, 1
        %v1730 = vadd.f32 %v1728, %v1729
        %v1731 = vsel %vm1306, %v1639, 0.0
        %v1732 = vrot.slane %v1731, 4
        %v1733 = vadd.f32 %v1731, %v1732
        %v1734 = vrot.slane %v1733, 2
        %v1735 = vadd.f32 %v1733, %v1734
        %v1736 = vrot.slane %v1735, 1
        %v1737 = vadd.f32 %v1735, %v1736
        %v1738 = vsel %vm1306, %v1640, 0.0
        %v1739 = vrot.slane %v1738, 4
        %v1740 = vadd.f32 %v1738, %v1739
        %v1741 = vrot.slane %v1740, 2
        %v1742 = vadd.f32 %v1740, %v1741
        %v1743 = vrot.slane %v1742, 1
        %v1744 = vadd.f32 %v1742, %v1743
        %v1745 = vsel %vm1306, %v1641, 0.0
        %v1746 = vrot.slane %v1745, 4
        %v1747 = vadd.f32 %v1745, %v1746
        %v1748 = vrot.slane %v1747, 2
        %v1749 = vadd.f32 %v1747, %v1748
        %v1750 = vrot.slane %v1749, 1
        %v1751 = vadd.f32 %v1749, %v1750
        %v1752 = vsel %vm1306, %v1642, 0.0
        %v1753 = vrot.slane %v1752, 4
        %v1754 = vadd.f32 %v1752, %v1753
        %v1755 = vrot.slane %v1754, 2
        %v1756 = vadd.f32 %v1754, %v1755
        %v1757 = vrot.slane %v1756, 1
        %v1758 = vadd.f32 %v1756, %v1757
        %v1759 = vsel %vm1306, %v1643, 0.0
        %v1760 = vrot.slane %v1759, 4
        %v1761 = vadd.f32 %v1759, %v1760
        %v1762 = vrot.slane %v1761, 2
        %v1763 = vadd.f32 %v1761, %v1762
        %v1764 = vrot.slane %v1763, 1
        %v1765 = vadd.f32 %v1763, %v1764
        %v1766 = vsel %vm1306, %v1644, 0.0
        %v1767 = vrot.slane %v1766, 4
        %v1768 = vadd.f32 %v1766, %v1767
        %v1769 = vrot.slane %v1768, 2
        %v1770 = vadd.f32 %v1768, %v1769
        %v1771 = vrot.slane %v1770, 1
        %v1772 = vadd.f32 %v1770, %v1771
        %v1773 = vsel %vm1306, %v1645, 0.0
        %v1774 = vrot.slane %v1773, 4
        %v1775 = vadd.f32 %v1773, %v1774
        %v1776 = vrot.slane %v1775, 2
        %v1777 = vadd.f32 %v1775, %v1776
        %v1778 = vrot.slane %v1777, 1
        %v1779 = vadd.f32 %v1777, %v1778
        %v1780 = vsel %vm1306, %v1646, 0.0
        %v1781 = vrot.slane %v1780, 4
        %v1782 = vadd.f32 %v1780, %v1781
        %v1783 = vrot.slane %v1782, 2
        %v1784 = vadd.f32 %v1782, %v1783
        %v1785 = vrot.slane %v1784, 1
        %v1786 = vadd.f32 %v1784, %v1785
        %v1787 = vsel %vm1306, %v1647, 0.0
        %v1788 = vrot.slane %v1787, 4
        %v1789 = vadd.f32 %v1787, %v1788
        %v1790 = vrot.slane %v1789, 2
        %v1791 = vadd.f32 %v1789, %v1790
        %v1792 = vrot.slane %v1791, 1
        %v1793 = vadd.f32 %v1791, %v1792
        %v1794 = vsel %vm1306, %v1648, 0.0
        %v1795 = vrot.slane %v1794, 4
        %v1796 = vadd.f32 %v1794, %v1795
        %v1797 = vrot.slane %v1796, 2
        %v1798 = vadd.f32 %v1796, %v1797
        %v1799 = vrot.slane %v1798, 1
        %v1800 = vadd.f32 %v1798, %v1799
        %v1801 = vsel %vm1306, %v1649, 0.0
        %v1802 = vrot.slane %v1801, 4
        %v1803 = vadd.f32 %v1801, %v1802
        %v1804 = vrot.slane %v1803, 2
        %v1805 = vadd.f32 %v1803, %v1804
        %v1806 = vrot.slane %v1805, 1
        %v1807 = vadd.f32 %v1805, %v1806
        %v1808 = vsel %vm1306, %v1650, 0.0
        %v1809 = vrot.slane %v1808, 4
        %v1810 = vadd.f32 %v1808, %v1809
        %v1811 = vrot.slane %v1810, 2
        %v1812 = vadd.f32 %v1810, %v1811
        %v1813 = vrot.slane %v1812, 1
        %v1814 = vadd.f32 %v1812, %v1813
        %v1815 = vsel %vm1306, %v1651, 0.0
        %v1816 = vrot.slane %v1815, 4
        %v1817 = vadd.f32 %v1815, %v1816
        %v1818 = vrot.slane %v1817, 2
        %v1819 = vadd.f32 %v1817, %v1818
        %v1820 = vrot.slane %v1819, 1
        %v1821 = vadd.f32 %v1819, %v1820
        %v1822 = vsel %vm1306, %v1652, 0.0
        %v1823 = vrot.slane %v1822, 4
        %v1824 = vadd.f32 %v1822, %v1823
        %v1825 = vrot.slane %v1824, 2
        %v1826 = vadd.f32 %v1824, %v1825
        %v1827 = vrot.slane %v1826, 1
        %v1828 = vadd.f32 %v1826, %v1827
        %v1829 = vsel %vm1306, %v1653, 0.0
        %v1830 = vrot.slane %v1829, 4
        %v1831 = vadd.f32 %v1829, %v1830
        %v1832 = vrot.slane %v1831, 2
        %v1833 = vadd.f32 %v1831, %v1832
        %v1834 = vrot.slane %v1833, 1
        %v1835 = vadd.f32 %v1833, %v1834
        %v1836 = vsel %vm1306, %v1654, 0.0
        %v1837 = vrot.slane %v1836, 4
        %v1838 = vadd.f32 %v1836, %v1837
        %v1839 = vrot.slane %v1838, 2
        %v1840 = vadd.f32 %v1838, %v1839
        %v1841 = vrot.slane %v1840, 1
        %v1842 = vadd.f32 %v1840, %v1841
        %v1843 = vsel %vm1306, %v1655, 0.0
        %v1844 = vrot.slane %v1843, 4
        %v1845 = vadd.f32 %v1843, %v1844
        %v1846 = vrot.slane %v1845, 2
        %v1847 = vadd.f32 %v1845, %v1846
        %v1848 = vrot.slane %v1847, 1
        %v1849 = vadd.f32 %v1847, %v1848
        %v1850 = vsel %vm1306, %v1656, 0.0
        %v1851 = vrot.slane %v1850, 4
        %v1852 = vadd.f32 %v1850, %v1851
        %v1853 = vrot.slane %v1852, 2
        %v1854 = vadd.f32 %v1852, %v1853
        %v1855 = vrot.slane %v1854, 1
        %v1856 = vadd.f32 %v1854, %v1855
        %v1857 = vsel %vm1306, %v1657, 0.0
        %v1858 = vrot.slane %v1857, 4
        %v1859 = vadd.f32 %v1857, %v1858
        %v1860 = vrot.slane %v1859, 2
        %v1861 = vadd.f32 %v1859, %v1860
        %v1862 = vrot.slane %v1861, 1
        %v1863 = vadd.f32 %v1861, %v1862
        %v1864 = vsel %vm1306, %v1658, 0.0
        %v1865 = vrot.slane %v1864, 4
        %v1866 = vadd.f32 %v1864, %v1865
        %v1867 = vrot.slane %v1866, 2
        %v1868 = vadd.f32 %v1866, %v1867
        %v1869 = vrot.slane %v1868, 1
        %v1870 = vadd.f32 %v1868, %v1869
        %v1871 = vsel %vm1306, %v1659, 0.0
        %v1872 = vrot.slane %v1871, 4
        %v1873 = vadd.f32 %v1871, %v1872
        %v1874 = vrot.slane %v1873, 2
        %v1875 = vadd.f32 %v1873, %v1874
        %v1876 = vrot.slane %v1875, 1
        %v1877 = vadd.f32 %v1875, %v1876
        %v1878 = vsel %vm1306, %v1660, 0.0
        %v1879 = vrot.slane %v1878, 4
        %v1880 = vadd.f32 %v1878, %v1879
        %v1881 = vrot.slane %v1880, 2
        %v1882 = vadd.f32 %v1880, %v1881
        %v1883 = vrot.slane %v1882, 1
        %v1884 = vadd.f32 %v1882, %v1883
        %v1885 = vmax.f32 %v1667, 1e-20
        %v1886 = vmax.f32 %v1674, 1e-20
        %v1887 = vmax.f32 %v1681, 1e-20
        %v1888 = vmax.f32 %v1688, 1e-20
        %v1889 = vmax.f32 %v1695, 1e-20
        %v1890 = vmax.f32 %v1702, 1e-20
        %v1891 = vmax.f32 %v1709, 1e-20
        %v1892 = vmax.f32 %v1716, 1e-20
        %v1893 = vmax.f32 %v1723, 1e-20
        %v1894 = vmax.f32 %v1730, 1e-20
        %v1895 = vmax.f32 %v1737, 1e-20
        %v1896 = vmax.f32 %v1744, 1e-20
        %v1897 = vmax.f32 %v1751, 1e-20
        %v1898 = vmax.f32 %v1758, 1e-20
        %v1899 = vmax.f32 %v1765, 1e-20
        %v1900 = vmax.f32 %v1772, 1e-20
        %v1901 = vmax.f32 %v1779, 1e-20
        %v1902 = vmax.f32 %v1786, 1e-20
        %v1903 = vmax.f32 %v1793, 1e-20
        %v1904 = vmax.f32 %v1800, 1e-20
        %v1905 = vmax.f32 %v1807, 1e-20
        %v1906 = vmax.f32 %v1814, 1e-20
        %v1907 = vmax.f32 %v1821, 1e-20
        %v1908 = vmax.f32 %v1828, 1e-20
        %v1909 = vmax.f32 %v1835, 1e-20
        %v1910 = vmax.f32 %v1842, 1e-20
        %v1911 = vmax.f32 %v1849, 1e-20
        %v1912 = vmax.f32 %v1856, 1e-20
        %v1913 = vmax.f32 %v1863, 1e-20
        %v1914 = vmax.f32 %v1870, 1e-20
        %v1915 = vmax.f32 %v1877, 1e-20
        %v1916 = vmax.f32 %v1884, 1e-20
        %v1917 = vrcp.pop %v1885
        %v1918 = vrcp.pop %v1886
        %v1919 = vrcp.pop %v1887
        %v1920 = vrcp.pop %v1888
        %v1921 = vrcp.pop %v1889
        %v1922 = vrcp.pop %v1890
        %v1923 = vrcp.pop %v1891
        %v1924 = vrcp.pop %v1892
        %v1925 = vrcp.pop %v1893
        %v1926 = vrcp.pop %v1894
        %v1927 = vrcp.pop %v1895
        %v1928 = vrcp.pop %v1896
        %v1929 = vrcp.pop %v1897
        %v1930 = vrcp.pop %v1898
        %v1931 = vrcp.pop %v1899
        %v1932 = vrcp.pop %v1900
        %v1933 = vrcp.pop %v1901
        %v1934 = vrcp.pop %v1902
        %v1935 = vrcp.pop %v1903
        %v1936 = vrcp.pop %v1904
        %v1937 = vrcp.pop %v1905
        %v1938 = vrcp.pop %v1906
        %v1939 = vrcp.pop %v1907
        %v1940 = vrcp.pop %v1908
        %v1941 = vrcp.pop %v1909
        %v1942 = vrcp.pop %v1910
        %v1943 = vrcp.pop %v1911
        %v1944 = vrcp.pop %v1912
        %v1945 = vrcp.pop %v1913
        %v1946 = vrcp.pop %v1914
        %v1947 = vrcp.pop %v1915
        %v1948 = vrcp.pop %v1916
        %v1949 = vmul.f32 %v1885, %v1917
        %v1950 = vmul.f32 %v1886, %v1918
        %v1951 = vmul.f32 %v1887, %v1919
        %v1952 = vmul.f32 %v1888, %v1920
        %v1953 = vmul.f32 %v1889, %v1921
        %v1954 = vmul.f32 %v1890, %v1922
        %v1955 = vmul.f32 %v1891, %v1923
        %v1956 = vmul.f32 %v1892, %v1924
        %v1957 = vmul.f32 %v1893, %v1925
        %v1958 = vmul.f32 %v1894, %v1926
        %v1959 = vmul.f32 %v1895, %v1927
        %v1960 = vmul.f32 %v1896, %v1928
        %v1961 = vmul.f32 %v1897, %v1929
        %v1962 = vmul.f32 %v1898, %v1930
        %v1963 = vmul.f32 %v1899, %v1931
        %v1964 = vmul.f32 %v1900, %v1932
        %v1965 = vmul.f32 %v1901, %v1933
        %v1966 = vmul.f32 %v1902, %v1934
        %v1967 = vmul.f32 %v1903, %v1935
        %v1968 = vmul.f32 %v1904, %v1936
        %v1969 = vmul.f32 %v1905, %v1937
        %v1970 = vmul.f32 %v1906, %v1938
        %v1971 = vmul.f32 %v1907, %v1939
        %v1972 = vmul.f32 %v1908, %v1940
        %v1973 = vmul.f32 %v1909, %v1941
        %v1974 = vmul.f32 %v1910, %v1942
        %v1975 = vmul.f32 %v1911, %v1943
        %v1976 = vmul.f32 %v1912, %v1944
        %v1977 = vmul.f32 %v1913, %v1945
        %v1978 = vmul.f32 %v1914, %v1946
        %v1979 = vmul.f32 %v1915, %v1947
        %v1980 = vmul.f32 %v1916, %v1948
        %v1981 = vsub.f32 2.0, %v1949
        %v1982 = vsub.f32 2.0, %v1950
        %v1983 = vsub.f32 2.0, %v1951
        %v1984 = vsub.f32 2.0, %v1952
        %v1985 = vsub.f32 2.0, %v1953
        %v1986 = vsub.f32 2.0, %v1954
        %v1987 = vsub.f32 2.0, %v1955
        %v1988 = vsub.f32 2.0, %v1956
        %v1989 = vsub.f32 2.0, %v1957
        %v1990 = vsub.f32 2.0, %v1958
        %v1991 = vsub.f32 2.0, %v1959
        %v1992 = vsub.f32 2.0, %v1960
        %v1993 = vsub.f32 2.0, %v1961
        %v1994 = vsub.f32 2.0, %v1962
        %v1995 = vsub.f32 2.0, %v1963
        %v1996 = vsub.f32 2.0, %v1964
        %v1997 = vsub.f32 2.0, %v1965
        %v1998 = vsub.f32 2.0, %v1966
        %v1999 = vsub.f32 2.0, %v1967
        %v2000 = vsub.f32 2.0, %v1968
        %v2001 = vsub.f32 2.0, %v1969
        %v2002 = vsub.f32 2.0, %v1970
        %v2003 = vsub.f32 2.0, %v1971
        %v2004 = vsub.f32 2.0, %v1972
        %v2005 = vsub.f32 2.0, %v1973
        %v2006 = vsub.f32 2.0, %v1974
        %v2007 = vsub.f32 2.0, %v1975
        %v2008 = vsub.f32 2.0, %v1976
        %v2009 = vsub.f32 2.0, %v1977
        %v2010 = vsub.f32 2.0, %v1978
        %v2011 = vsub.f32 2.0, %v1979
        %v2012 = vsub.f32 2.0, %v1980
        %v2013 = vmul.f32 %v1917, %v1981
        %v2014 = vmul.f32 %v1918, %v1982
        %v2015 = vmul.f32 %v1919, %v1983
        %v2016 = vmul.f32 %v1920, %v1984
        %v2017 = vmul.f32 %v1921, %v1985
        %v2018 = vmul.f32 %v1922, %v1986
        %v2019 = vmul.f32 %v1923, %v1987
        %v2020 = vmul.f32 %v1924, %v1988
        %v2021 = vmul.f32 %v1925, %v1989
        %v2022 = vmul.f32 %v1926, %v1990
        %v2023 = vmul.f32 %v1927, %v1991
        %v2024 = vmul.f32 %v1928, %v1992
        %v2025 = vmul.f32 %v1929, %v1993
        %v2026 = vmul.f32 %v1930, %v1994
        %v2027 = vmul.f32 %v1931, %v1995
        %v2028 = vmul.f32 %v1932, %v1996
        %v2029 = vmul.f32 %v1933, %v1997
        %v2030 = vmul.f32 %v1934, %v1998
        %v2031 = vmul.f32 %v1935, %v1999
        %v2032 = vmul.f32 %v1936, %v2000
        %v2033 = vmul.f32 %v1937, %v2001
        %v2034 = vmul.f32 %v1938, %v2002
        %v2035 = vmul.f32 %v1939, %v2003
        %v2036 = vmul.f32 %v1940, %v2004
        %v2037 = vmul.f32 %v1941, %v2005
        %v2038 = vmul.f32 %v1942, %v2006
        %v2039 = vmul.f32 %v1943, %v2007
        %v2040 = vmul.f32 %v1944, %v2008
        %v2041 = vmul.f32 %v1945, %v2009
        %v2042 = vmul.f32 %v1946, %v2010
        %v2043 = vmul.f32 %v1947, %v2011
        %v2044 = vmul.f32 %v1948, %v2012
        %v2045 = vmul.f32 %v1629, %v2013
        %v2046 = vmul.f32 %v1630, %v2014
        %v2047 = vmul.f32 %v1631, %v2015
        %v2048 = vmul.f32 %v1632, %v2016
        %v2049 = vmul.f32 %v1633, %v2017
        %v2050 = vmul.f32 %v1634, %v2018
        %v2051 = vmul.f32 %v1635, %v2019
        %v2052 = vmul.f32 %v1636, %v2020
        %v2053 = vmul.f32 %v1637, %v2021
        %v2054 = vmul.f32 %v1638, %v2022
        %v2055 = vmul.f32 %v1639, %v2023
        %v2056 = vmul.f32 %v1640, %v2024
        %v2057 = vmul.f32 %v1641, %v2025
        %v2058 = vmul.f32 %v1642, %v2026
        %v2059 = vmul.f32 %v1643, %v2027
        %v2060 = vmul.f32 %v1644, %v2028
        %v2061 = vmul.f32 %v1645, %v2029
        %v2062 = vmul.f32 %v1646, %v2030
        %v2063 = vmul.f32 %v1647, %v2031
        %v2064 = vmul.f32 %v1648, %v2032
        %v2065 = vmul.f32 %v1649, %v2033
        %v2066 = vmul.f32 %v1650, %v2034
        %v2067 = vmul.f32 %v1651, %v2035
        %v2068 = vmul.f32 %v1652, %v2036
        %v2069 = vmul.f32 %v1653, %v2037
        %v2070 = vmul.f32 %v1654, %v2038
        %v2071 = vmul.f32 %v1655, %v2039
        %v2072 = vmul.f32 %v1656, %v2040
        %v2073 = vmul.f32 %v1657, %v2041
        %v2074 = vmul.f32 %v1658, %v2042
        %v2075 = vmul.f32 %v1659, %v2043
        %v2076 = vmul.f32 %v1660, %v2044
        %2078 = vset.pattern.permute.xlu0 0
        %2079 = vperm.xlu0 %2078, %v2045
        %v2080 = vpop.permute.xlu0 %2079
        %2083 = vset.pattern.permute.xlu0 0
        %2084 = vperm.xlu0 %2083, %v2046
        %v2085 = vpop.permute.xlu0 %2084
        %2088 = vset.pattern.permute.xlu0 0
        %2089 = vperm.xlu0 %2088, %v2047
        %v2090 = vpop.permute.xlu0 %2089
        %2093 = vset.pattern.permute.xlu0 0
        %2094 = vperm.xlu0 %2093, %v2048
        %v2095 = vpop.permute.xlu0 %2094
        %2098 = vset.pattern.permute.xlu0 0
        %2099 = vperm.xlu0 %2098, %v2049
        %v2100 = vpop.permute.xlu0 %2099
        %2103 = vset.pattern.permute.xlu0 0
        %2104 = vperm.xlu0 %2103, %v2050
        %v2105 = vpop.permute.xlu0 %2104
        %2108 = vset.pattern.permute.xlu0 0
        %2109 = vperm.xlu0 %2108, %v2051
        %v2110 = vpop.permute.xlu0 %2109
        %2113 = vset.pattern.permute.xlu0 0
        %2114 = vperm.xlu0 %2113, %v2052
        %v2115 = vpop.permute.xlu0 %2114
        %2118 = vset.pattern.permute.xlu0 0
        %2119 = vperm.xlu0 %2118, %v2053
        %v2120 = vpop.permute.xlu0 %2119
        %2123 = vset.pattern.permute.xlu0 0
        %2124 = vperm.xlu0 %2123, %v2054
        %v2125 = vpop.permute.xlu0 %2124
        %2128 = vset.pattern.permute.xlu0 0
        %2129 = vperm.xlu0 %2128, %v2055
        %v2130 = vpop.permute.xlu0 %2129
        %2133 = vset.pattern.permute.xlu0 0
        %2134 = vperm.xlu0 %2133, %v2056
        %v2135 = vpop.permute.xlu0 %2134
        %2138 = vset.pattern.permute.xlu0 0
        %2139 = vperm.xlu0 %2138, %v2057
        %v2140 = vpop.permute.xlu0 %2139
        %2143 = vset.pattern.permute.xlu0 0
        %2144 = vperm.xlu0 %2143, %v2058
        %v2145 = vpop.permute.xlu0 %2144
        %2148 = vset.pattern.permute.xlu0 0
        %2149 = vperm.xlu0 %2148, %v2059
        %v2150 = vpop.permute.xlu0 %2149
        %2153 = vset.pattern.permute.xlu0 0
        %2154 = vperm.xlu0 %2153, %v2060
        %v2155 = vpop.permute.xlu0 %2154
        %2158 = vset.pattern.permute.xlu0 0
        %2159 = vperm.xlu0 %2158, %v2061
        %v2160 = vpop.permute.xlu0 %2159
        %2163 = vset.pattern.permute.xlu0 0
        %2164 = vperm.xlu0 %2163, %v2062
        %v2165 = vpop.permute.xlu0 %2164
        %2168 = vset.pattern.permute.xlu0 0
        %2169 = vperm.xlu0 %2168, %v2063
        %v2170 = vpop.permute.xlu0 %2169
        %2173 = vset.pattern.permute.xlu0 0
        %2174 = vperm.xlu0 %2173, %v2064
        %v2175 = vpop.permute.xlu0 %2174
        %2178 = vset.pattern.permute.xlu0 0
        %2179 = vperm.xlu0 %2178, %v2065
        %v2180 = vpop.permute.xlu0 %2179
        %2183 = vset.pattern.permute.xlu0 0
        %2184 = vperm.xlu0 %2183, %v2066
        %v2185 = vpop.permute.xlu0 %2184
        %2188 = vset.pattern.permute.xlu0 0
        %2189 = vperm.xlu0 %2188, %v2067
        %v2190 = vpop.permute.xlu0 %2189
        %2193 = vset.pattern.permute.xlu0 0
        %2194 = vperm.xlu0 %2193, %v2068
        %v2195 = vpop.permute.xlu0 %2194
        %2198 = vset.pattern.permute.xlu0 0
        %2199 = vperm.xlu0 %2198, %v2069
        %v2200 = vpop.permute.xlu0 %2199
        %2203 = vset.pattern.permute.xlu0 0
        %2204 = vperm.xlu0 %2203, %v2070
        %v2205 = vpop.permute.xlu0 %2204
        %2208 = vset.pattern.permute.xlu0 0
        %2209 = vperm.xlu0 %2208, %v2071
        %v2210 = vpop.permute.xlu0 %2209
        %2213 = vset.pattern.permute.xlu0 0
        %2214 = vperm.xlu0 %2213, %v2072
        %v2215 = vpop.permute.xlu0 %2214
        %2218 = vset.pattern.permute.xlu0 0
        %2219 = vperm.xlu0 %2218, %v2073
        %v2220 = vpop.permute.xlu0 %2219
        %2223 = vset.pattern.permute.xlu0 0
        %2224 = vperm.xlu0 %2223, %v2074
        %v2225 = vpop.permute.xlu0 %2224
        %2228 = vset.pattern.permute.xlu0 0
        %2229 = vperm.xlu0 %2228, %v2075
        %v2230 = vpop.permute.xlu0 %2229
        %2233 = vset.pattern.permute.xlu0 0
        %2234 = vperm.xlu0 %2233, %v2076
        %v2235 = vpop.permute.xlu0 %2234
        %v2237 = vmul.f32 %v2080, %v497
        %v2238 = vmul.f32 %v2085, %v502
        %v2239 = vmul.f32 %v2090, %v507
        %v2240 = vmul.f32 %v2095, %v512
        %v2241 = vmul.f32 %v2100, %v517
        %v2242 = vmul.f32 %v2105, %v522
        %v2243 = vmul.f32 %v2110, %v527
        %v2244 = vmul.f32 %v2115, %v532
        %v2245 = vmul.f32 %v2120, %v537
        %v2246 = vmul.f32 %v2125, %v542
        %v2247 = vmul.f32 %v2130, %v547
        %v2248 = vmul.f32 %v2135, %v552
        %v2249 = vmul.f32 %v2140, %v557
        %v2250 = vmul.f32 %v2145, %v562
        %v2251 = vmul.f32 %v2150, %v567
        %v2252 = vmul.f32 %v2155, %v572
        %v2253 = vmul.f32 %v2160, %v577
        %v2254 = vmul.f32 %v2165, %v582
        %v2255 = vmul.f32 %v2170, %v587
        %v2256 = vmul.f32 %v2175, %v592
        %v2257 = vmul.f32 %v2180, %v597
        %v2258 = vmul.f32 %v2185, %v602
        %v2259 = vmul.f32 %v2190, %v607
        %v2260 = vmul.f32 %v2195, %v612
        %v2261 = vmul.f32 %v2200, %v617
        %v2262 = vmul.f32 %v2205, %v622
        %v2263 = vmul.f32 %v2210, %v627
        %v2264 = vmul.f32 %v2215, %v632
        %v2265 = vmul.f32 %v2220, %v637
        %v2266 = vmul.f32 %v2225, %v642
        %v2267 = vmul.f32 %v2230, %v647
        %v2268 = vmul.f32 %v2235, %v652
        %v2269 = vrot.slane %v2237, 4
        %v2270 = vadd.f32 %v2237, %v2269
        %v2271 = vrot.slane %v2270, 2
        %v2272 = vadd.f32 %v2270, %v2271
        %v2273 = vrot.slane %v2272, 1
        %v2274 = vadd.f32 %v2272, %v2273
        %v2275 = vrot.slane %v2238, 4
        %v2276 = vadd.f32 %v2238, %v2275
        %v2277 = vrot.slane %v2276, 2
        %v2278 = vadd.f32 %v2276, %v2277
        %v2279 = vrot.slane %v2278, 1
        %v2280 = vadd.f32 %v2278, %v2279
        %v2281 = vrot.slane %v2239, 4
        %v2282 = vadd.f32 %v2239, %v2281
        %v2283 = vrot.slane %v2282, 2
        %v2284 = vadd.f32 %v2282, %v2283
        %v2285 = vrot.slane %v2284, 1
        %v2286 = vadd.f32 %v2284, %v2285
        %v2287 = vrot.slane %v2240, 4
        %v2288 = vadd.f32 %v2240, %v2287
        %v2289 = vrot.slane %v2288, 2
        %v2290 = vadd.f32 %v2288, %v2289
        %v2291 = vrot.slane %v2290, 1
        %v2292 = vadd.f32 %v2290, %v2291
        %v2293 = vrot.slane %v2241, 4
        %v2294 = vadd.f32 %v2241, %v2293
        %v2295 = vrot.slane %v2294, 2
        %v2296 = vadd.f32 %v2294, %v2295
        %v2297 = vrot.slane %v2296, 1
        %v2298 = vadd.f32 %v2296, %v2297
        %v2299 = vrot.slane %v2242, 4
        %v2300 = vadd.f32 %v2242, %v2299
        %v2301 = vrot.slane %v2300, 2
        %v2302 = vadd.f32 %v2300, %v2301
        %v2303 = vrot.slane %v2302, 1
        %v2304 = vadd.f32 %v2302, %v2303
        %v2305 = vrot.slane %v2243, 4
        %v2306 = vadd.f32 %v2243, %v2305
        %v2307 = vrot.slane %v2306, 2
        %v2308 = vadd.f32 %v2306, %v2307
        %v2309 = vrot.slane %v2308, 1
        %v2310 = vadd.f32 %v2308, %v2309
        %v2311 = vrot.slane %v2244, 4
        %v2312 = vadd.f32 %v2244, %v2311
        %v2313 = vrot.slane %v2312, 2
        %v2314 = vadd.f32 %v2312, %v2313
        %v2315 = vrot.slane %v2314, 1
        %v2316 = vadd.f32 %v2314, %v2315
        %v2317 = vrot.slane %v2245, 4
        %v2318 = vadd.f32 %v2245, %v2317
        %v2319 = vrot.slane %v2318, 2
        %v2320 = vadd.f32 %v2318, %v2319
        %v2321 = vrot.slane %v2320, 1
        %v2322 = vadd.f32 %v2320, %v2321
        %v2323 = vrot.slane %v2246, 4
        %v2324 = vadd.f32 %v2246, %v2323
        %v2325 = vrot.slane %v2324, 2
        %v2326 = vadd.f32 %v2324, %v2325
        %v2327 = vrot.slane %v2326, 1
        %v2328 = vadd.f32 %v2326, %v2327
        %v2329 = vrot.slane %v2247, 4
        %v2330 = vadd.f32 %v2247, %v2329
        %v2331 = vrot.slane %v2330, 2
        %v2332 = vadd.f32 %v2330, %v2331
        %v2333 = vrot.slane %v2332, 1
        %v2334 = vadd.f32 %v2332, %v2333
        %v2335 = vrot.slane %v2248, 4
        %v2336 = vadd.f32 %v2248, %v2335
        %v2337 = vrot.slane %v2336, 2
        %v2338 = vadd.f32 %v2336, %v2337
        %v2339 = vrot.slane %v2338, 1
        %v2340 = vadd.f32 %v2338, %v2339
        %v2341 = vrot.slane %v2249, 4
        %v2342 = vadd.f32 %v2249, %v2341
        %v2343 = vrot.slane %v2342, 2
        %v2344 = vadd.f32 %v2342, %v2343
        %v2345 = vrot.slane %v2344, 1
        %v2346 = vadd.f32 %v2344, %v2345
        %v2347 = vrot.slane %v2250, 4
        %v2348 = vadd.f32 %v2250, %v2347
        %v2349 = vrot.slane %v2348, 2
        %v2350 = vadd.f32 %v2348, %v2349
        %v2351 = vrot.slane %v2350, 1
        %v2352 = vadd.f32 %v2350, %v2351
        %v2353 = vrot.slane %v2251, 4
        %v2354 = vadd.f32 %v2251, %v2353
        %v2355 = vrot.slane %v2354, 2
        %v2356 = vadd.f32 %v2354, %v2355
        %v2357 = vrot.slane %v2356, 1
        %v2358 = vadd.f32 %v2356, %v2357
        %v2359 = vrot.slane %v2252, 4
        %v2360 = vadd.f32 %v2252, %v2359
        %v2361 = vrot.slane %v2360, 2
        %v2362 = vadd.f32 %v2360, %v2361
        %v2363 = vrot.slane %v2362, 1
        %v2364 = vadd.f32 %v2362, %v2363
        %v2365 = vrot.slane %v2253, 4
        %v2366 = vadd.f32 %v2253, %v2365
        %v2367 = vrot.slane %v2366, 2
        %v2368 = vadd.f32 %v2366, %v2367
        %v2369 = vrot.slane %v2368, 1
        %v2370 = vadd.f32 %v2368, %v2369
        %v2371 = vrot.slane %v2254, 4
        %v2372 = vadd.f32 %v2254, %v2371
        %v2373 = vrot.slane %v2372, 2
        %v2374 = vadd.f32 %v2372, %v2373
        %v2375 = vrot.slane %v2374, 1
        %v2376 = vadd.f32 %v2374, %v2375
        %v2377 = vrot.slane %v2255, 4
        %v2378 = vadd.f32 %v2255, %v2377
        %v2379 = vrot.slane %v2378, 2
        %v2380 = vadd.f32 %v2378, %v2379
        %v2381 = vrot.slane %v2380, 1
        %v2382 = vadd.f32 %v2380, %v2381
        %v2383 = vrot.slane %v2256, 4
        %v2384 = vadd.f32 %v2256, %v2383
        %v2385 = vrot.slane %v2384, 2
        %v2386 = vadd.f32 %v2384, %v2385
        %v2387 = vrot.slane %v2386, 1
        %v2388 = vadd.f32 %v2386, %v2387
        %v2389 = vrot.slane %v2257, 4
        %v2390 = vadd.f32 %v2257, %v2389
        %v2391 = vrot.slane %v2390, 2
        %v2392 = vadd.f32 %v2390, %v2391
        %v2393 = vrot.slane %v2392, 1
        %v2394 = vadd.f32 %v2392, %v2393
        %v2395 = vrot.slane %v2258, 4
        %v2396 = vadd.f32 %v2258, %v2395
        %v2397 = vrot.slane %v2396, 2
        %v2398 = vadd.f32 %v2396, %v2397
        %v2399 = vrot.slane %v2398, 1
        %v2400 = vadd.f32 %v2398, %v2399
        %v2401 = vrot.slane %v2259, 4
        %v2402 = vadd.f32 %v2259, %v2401
        %v2403 = vrot.slane %v2402, 2
        %v2404 = vadd.f32 %v2402, %v2403
        %v2405 = vrot.slane %v2404, 1
        %v2406 = vadd.f32 %v2404, %v2405
        %v2407 = vrot.slane %v2260, 4
        %v2408 = vadd.f32 %v2260, %v2407
        %v2409 = vrot.slane %v2408, 2
        %v2410 = vadd.f32 %v2408, %v2409
        %v2411 = vrot.slane %v2410, 1
        %v2412 = vadd.f32 %v2410, %v2411
        %v2413 = vrot.slane %v2261, 4
        %v2414 = vadd.f32 %v2261, %v2413
        %v2415 = vrot.slane %v2414, 2
        %v2416 = vadd.f32 %v2414, %v2415
        %v2417 = vrot.slane %v2416, 1
        %v2418 = vadd.f32 %v2416, %v2417
        %v2419 = vrot.slane %v2262, 4
        %v2420 = vadd.f32 %v2262, %v2419
        %v2421 = vrot.slane %v2420, 2
        %v2422 = vadd.f32 %v2420, %v2421
        %v2423 = vrot.slane %v2422, 1
        %v2424 = vadd.f32 %v2422, %v2423
        %v2425 = vrot.slane %v2263, 4
        %v2426 = vadd.f32 %v2263, %v2425
        %v2427 = vrot.slane %v2426, 2
        %v2428 = vadd.f32 %v2426, %v2427
        %v2429 = vrot.slane %v2428, 1
        %v2430 = vadd.f32 %v2428, %v2429
        %v2431 = vrot.slane %v2264, 4
        %v2432 = vadd.f32 %v2264, %v2431
        %v2433 = vrot.slane %v2432, 2
        %v2434 = vadd.f32 %v2432, %v2433
        %v2435 = vrot.slane %v2434, 1
        %v2436 = vadd.f32 %v2434, %v2435
        %v2437 = vrot.slane %v2265, 4
        %v2438 = vadd.f32 %v2265, %v2437
        %v2439 = vrot.slane %v2438, 2
        %v2440 = vadd.f32 %v2438, %v2439
        %v2441 = vrot.slane %v2440, 1
        %v2442 = vadd.f32 %v2440, %v2441
        %v2443 = vrot.slane %v2266, 4
        %v2444 = vadd.f32 %v2266, %v2443
        %v2445 = vrot.slane %v2444, 2
        %v2446 = vadd.f32 %v2444, %v2445
        %v2447 = vrot.slane %v2446, 1
        %v2448 = vadd.f32 %v2446, %v2447
        %v2449 = vrot.slane %v2267, 4
        %v2450 = vadd.f32 %v2267, %v2449
        %v2451 = vrot.slane %v2450, 2
        %v2452 = vadd.f32 %v2450, %v2451
        %v2453 = vrot.slane %v2452, 1
        %v2454 = vadd.f32 %v2452, %v2453
        %v2455 = vrot.slane %v2268, 4
        %v2456 = vadd.f32 %v2268, %v2455
        %v2457 = vrot.slane %v2456, 2
        %v2458 = vadd.f32 %v2456, %v2457
        %v2459 = vrot.slane %v2458, 1
        %v2460 = vadd.f32 %v2458, %v2459
        %v2461 = vld [vmem:[%s3] sm:$0x1]
        %v2463 = vlaneseq
        %v2464 = vshrl.u32 %v2463, 7
        %v2465 = vsub.s32 0, %v2464
        %v2466 = vrot.slane %v2461, %v2465
        %v2468 = vadd.f32 %v2274, %v2466
        %v2469 = vadd.f32 %v2280, %v2466
        %v2470 = vadd.f32 %v2286, %v2466
        %v2471 = vadd.f32 %v2292, %v2466
        %v2472 = vadd.f32 %v2298, %v2466
        %v2473 = vadd.f32 %v2304, %v2466
        %v2474 = vadd.f32 %v2310, %v2466
        %v2475 = vadd.f32 %v2316, %v2466
        %v2476 = vadd.f32 %v2322, %v2466
        %v2477 = vadd.f32 %v2328, %v2466
        %v2478 = vadd.f32 %v2334, %v2466
        %v2479 = vadd.f32 %v2340, %v2466
        %v2480 = vadd.f32 %v2346, %v2466
        %v2481 = vadd.f32 %v2352, %v2466
        %v2482 = vadd.f32 %v2358, %v2466
        %v2483 = vadd.f32 %v2364, %v2466
        %v2484 = vadd.f32 %v2370, %v2466
        %v2485 = vadd.f32 %v2376, %v2466
        %v2486 = vadd.f32 %v2382, %v2466
        %v2487 = vadd.f32 %v2388, %v2466
        %v2488 = vadd.f32 %v2394, %v2466
        %v2489 = vadd.f32 %v2400, %v2466
        %v2490 = vadd.f32 %v2406, %v2466
        %v2491 = vadd.f32 %v2412, %v2466
        %v2492 = vadd.f32 %v2418, %v2466
        %v2493 = vadd.f32 %v2424, %v2466
        %v2494 = vadd.f32 %v2430, %v2466
        %v2495 = vadd.f32 %v2436, %v2466
        %v2496 = vadd.f32 %v2442, %v2466
        %v2497 = vadd.f32 %v2448, %v2466
        %v2498 = vadd.f32 %v2454, %v2466
        %v2499 = vadd.f32 %v2460, %v2466
        %v2532 = vrot.slane %v2469, 7
        %vm2533 = vcmask 1041409
        %v2534 = vsel %vm2533, %v2532, %v2468
        %v2535 = vrot.slane %v2470, 6
        %vm2536 = vcmask 1042434
        %v2537 = vsel %vm2536, %v2535, %v2534
        %v2538 = vrot.slane %v2471, 5
        %vm2539 = vcmask 1043459
        %v2540 = vsel %vm2539, %v2538, %v2537
        %v2541 = vrot.slane %v2472, 4
        %vm2542 = vcmask 1044484
        %v2543 = vsel %vm2542, %v2541, %v2540
        %v2544 = vrot.slane %v2473, 3
        %vm2545 = vcmask 1045509
        %v2546 = vsel %vm2545, %v2544, %v2543
        %v2547 = vrot.slane %v2474, 2
        %vm2548 = vcmask 1046534
        %v2549 = vsel %vm2548, %v2547, %v2546
        %v2550 = vrot.slane %v2475, 1
        %vm2551 = vcmask 1047559
        %v2552 = vsel %vm2551, %v2550, %v2549
        %v2553 = vrot.slane %v2477, 7
        %v2554 = vsel %vm2533, %v2553, %v2476
        %v2555 = vrot.slane %v2478, 6
        %v2556 = vsel %vm2536, %v2555, %v2554
        %v2557 = vrot.slane %v2479, 5
        %v2558 = vsel %vm2539, %v2557, %v2556
        %v2559 = vrot.slane %v2480, 4
        %v2560 = vsel %vm2542, %v2559, %v2558
        %v2561 = vrot.slane %v2481, 3
        %v2562 = vsel %vm2545, %v2561, %v2560
        %v2563 = vrot.slane %v2482, 2
        %v2564 = vsel %vm2548, %v2563, %v2562
        %v2565 = vrot.slane %v2483, 1
        %v2566 = vsel %vm2551, %v2565, %v2564
        %v2567 = vrot.slane %v2485, 7
        %v2568 = vsel %vm2533, %v2567, %v2484
        %v2569 = vrot.slane %v2486, 6
        %v2570 = vsel %vm2536, %v2569, %v2568
        %v2571 = vrot.slane %v2487, 5
        %v2572 = vsel %vm2539, %v2571, %v2570
        %v2573 = vrot.slane %v2488, 4
        %v2574 = vsel %vm2542, %v2573, %v2572
        %v2575 = vrot.slane %v2489, 3
        %v2576 = vsel %vm2545, %v2575, %v2574
        %v2577 = vrot.slane %v2490, 2
        %v2578 = vsel %vm2548, %v2577, %v2576
        %v2579 = vrot.slane %v2491, 1
        %v2580 = vsel %vm2551, %v2579, %v2578
        %v2581 = vrot.slane %v2493, 7
        %v2582 = vsel %vm2533, %v2581, %v2492
        %v2583 = vrot.slane %v2494, 6
        %v2584 = vsel %vm2536, %v2583, %v2582
        %v2585 = vrot.slane %v2495, 5
        %v2586 = vsel %vm2539, %v2585, %v2584
        %v2587 = vrot.slane %v2496, 4
        %v2588 = vsel %vm2542, %v2587, %v2586
        %v2589 = vrot.slane %v2497, 3
        %v2590 = vsel %vm2545, %v2589, %v2588
        %v2591 = vrot.slane %v2498, 2
        %v2592 = vsel %vm2548, %v2591, %v2590
        %v2593 = vrot.slane %v2499, 1
        %v2594 = vsel %vm2551, %v2593, %v2592
        %2599 = vst [vmem:[%s191] sm:$0xff] %v2552
        %2600 = vst [vmem:[%s191 + $0x8] sm:$0xff] %v2566
        %2601 = vst [vmem:[%s191 + $0x10] sm:$0xff] %v2580
        %2602 = vst [vmem:[%s191 + $0x18] sm:$0xff] %v2594
        %s2603 = sand.u32 %s115, 1
        %s2604 = scalar_lea.sflag [#allocation3], %s2603
        %s2605 = sand.u32 %s115, 1
        %s2606 = smul.addr %s2605, 32
        %s2607 = scalar_lea.vmem [#allocation2], %s2606
        // Predicated region
        $region37: #{tpu_custom_call.1} parent=35 // pred_check
          %p2608 = pneg %p125
        $region38: #{tpu_custom_call.1} parent=35 // pred_check_branch
          %2610 = sbr.rel (%p2608) target = $region40
        $region39: #{tpu_custom_call.1} parent=35 // pred_region
          %s2611 = smul.u32 4, %s18
          %s2613 = ssub.s32 512, 512
          %2614 = vsyncadd %s2604, %s2613
          %s2615 = smul.addr %s2611, 128
          %s2616 = scalar_lea.hbm %s4, %s2615
          %s2617 = sshll.u32 %s2607, 4
          %s2618 = int_to_ptr.vmem [resolvable:$true] %s2617
          %2623 = dma.vmem_to_hbm [thread:$0]  %s2618, 512, %s2616, %s2604, 128, 128, 8
        $region40: #{tpu_custom_call.1} parent=35 // pred_fallthru
          _
      $region36: #{tpu_custom_call.1} parent=5 // pred_fallthru
        _
      %p2624 = scmp.le.s32.totalorder 2, %s13
      // Predicated region
      $region41: #{tpu_custom_call.1} parent=5 // pred_check
        %p2625 = pneg %p2624
      $region42: #{tpu_custom_call.1} parent=5 // pred_check_branch
        %2627 = sbr.rel (%p2625) target = $region44
      $region43: #{tpu_custom_call.1} parent=5 // pred_region
        %s2628 = ssub.s32 %s13, 2
        // Predicated region
        $region45: #{tpu_custom_call.1} parent=43 // pred_check
          %p2629 = pneg %p131
        $region46: #{tpu_custom_call.1} parent=43 // pred_check_branch
          %2631 = sbr.rel (%p2629) target = $region48
        $region47: #{tpu_custom_call.1} parent=43 // pred_region
          %s2632 = sand.u32 %s116, 1
          %s2633 = scalar_lea.sflag [#allocation3], %s2632
          %s2634 = sand.u32 %s116, 1
          %s2635 = smul.addr %s2634, 32
          %s2636 = scalar_lea.vmem [#allocation2], %s2635
          %2637 = dma.done %s2633, 512
        $region48: #{tpu_custom_call.1} parent=43 // pred_fallthru
          _
      $region44: #{tpu_custom_call.1} parent=5 // pred_fallthru
        _
    $region6: #{tpu_custom_call.1} parent=1 // loop_footer
      %s17 = sadd.s32 1, %s13
    $region7: #{tpu_custom_call.1} parent=1 // loop_footer_branch
      %12 = sbr.rel target = $region3
    $region8: #{tpu_custom_call.1} parent=1 // loop_exit
      _
    %2638 = vsyncpa [#allocation3], 1
    %s2639 = scalar_lea.sflag [#allocation3], 1
    %2640 = vsyncpa %s2639, 1

</llo_original>
